<compile_context>
chip_gen: v5e
topology: v5e:2x2
jax: 0.10.0
libtpu: 0.0.40
codegen_flags: <defaults>
</compile_context>

<pallas_src>
import jax
import jax.numpy as jnp
import numpy as np
from jax.experimental import pallas as pl
from jax.experimental.pallas import tpu as pltpu

HIDDEN = 512
N_ACTIONS = 21
HEAD_PAD = 128  # lane-dense head width (>= N_ACTIONS, multiple of 128)


def qnet_kernel(x_ref,
                w1_ref, b1_ref,
                w2_ref, b2_ref,
                w3_ref, b3_ref,
                w4_ref, b4_ref,
                o_ref):
    # Input cast to bf16 inside the kernel (cheap VPU op, avoids a wrapper-side
    # HBM round trip). All matmuls: bf16 operands, f32 MXU accumulation.
    x = x_ref[...].astype(jnp.bfloat16)
    # fc1 -> ReLU
    h = jnp.dot(x, w1_ref[...], preferred_element_type=jnp.float32) + b1_ref[...]
    h = jnp.maximum(h, 0.0).astype(jnp.bfloat16)
    # fc2 -> ReLU
    h = jnp.dot(h, w2_ref[...], preferred_element_type=jnp.float32) + b2_ref[...]
    h = jnp.maximum(h, 0.0).astype(jnp.bfloat16)
    # fc3 -> ReLU
    h = jnp.dot(h, w3_ref[...], preferred_element_type=jnp.float32) + b3_ref[...]
    h = jnp.maximum(h, 0.0).astype(jnp.bfloat16)
    # fc4 head: lane-dense (HIDDEN, 128); lanes >= N_ACTIONS are zero-padded.
    q = jnp.dot(h, w4_ref[...], preferred_element_type=jnp.float32) + b4_ref[...]
    o_ref[...] = q.astype(o_ref.dtype)


def _round_up(v, m):
    return ((v + m - 1) // m) * m


def _choose_tile(batch, tile_b):
    """Pick the batch tile.

    - multiple of 8 (sublane granularity), preferring multiples of 256
      (good for v6e/v7x's 256-wide MXU, also a 128 multiple for v5e's 4x128x128),
    - >= 2 grid steps for large batches so both v7x TensorCores get work.
    """
    tile_b = max(8, _round_up(tile_b, 8))
    if batch <= 8:
        return 8
    if batch >= 512:
        # Cap the tile so the grid has at least 2 steps (megacore on v7x).
        half = _round_up((batch + 1) // 2, 256)
        return max(256, min(tile_b, half))
    # Small/medium batch: single tile unless the caller forces a smaller one.
    return min(_round_up(batch, 8), tile_b)


def qnet_forward(x, params, *, tile_b=512):
    """Qnet forward. x: (B, feature), any float dtype. Returns (B, 21) f32."""
    B, F = x.shape
    tb = _choose_tile(B, tile_b)
    b_pad = _round_up(B, tb)

    x_in = x
    if b_pad != B:
        # Pad only when needed; padded rows compute garbage and are sliced off.
        x_in = jnp.pad(x, ((0, b_pad - B), (0, 0)))

    # Lane-dense head: zero-pad the 21-wide head to 128 output lanes (~110 KB).
    w4 = jnp.pad(params["w4"], ((0, 0), (0, HEAD_PAD - N_ACTIONS)))
    b4 = jnp.pad(params["b4"], ((0, 0), (0, HEAD_PAD - N_ACTIONS)))

    grid = (b_pad // tb,)

    # Weight/bias blocks: constant index_map -> DMA'd once, VMEM-resident
    # across all batch-grid steps.
    resident = lambda shape: pl.BlockSpec(shape, lambda i: (0, 0))

    # ---- VMEM budget guard (matters for large F on v7x's 64 MiB VMEM). ----
    bf16 = 2
    w1_bytes = F * HIDDEN * bf16
    single_buffer_w1 = 2 * w1_bytes > (16 << 20)
    if single_buffer_w1:
        # A constant-index weight block never needs a second pipeline buffer.
        w1_spec = pl.BlockSpec((F, HIDDEN), lambda i: (0, 0),
                               pipeline_mode=pl.Buffered(1))
        w1_bufs = 1
    else:
        w1_spec = resident((F, HIDDEN))
        w1_bufs = 2

    x_itemsize = jnp.dtype(x.dtype).itemsize
    resident_bytes = (
        w1_bufs * w1_bytes
        + 2 * (2 * HIDDEN * HIDDEN * bf16 + HIDDEN * HEAD_PAD * bf16)
        + 2 * tb * F * x_itemsize          # x tile, double-buffered
        + 2 * tb * HEAD_PAD * 4            # out tile, double-buffered
        + 4 * tb * HIDDEN * 4)             # rough in-kernel f32/bf16 temporaries
    vmem_limit = None
    if resident_bytes > (30 << 20):
        # TODO(synk): if F is so large that even this exceeds ~60 MiB, add a
        # K-tiling grid axis over F for fc1 with an f32 accumulator scratch.
        vmem_limit = int(min(resident_bytes + (8 << 20), 60 << 20))

    cp_kwargs = dict(dimension_semantics=("parallel",))  # megacore sharding on v7x
    if vmem_limit is not None:
        cp_kwargs["vmem_limit_bytes"] = vmem_limit

    flops = 2 * b_pad * (F * HIDDEN + 2 * HIDDEN * HIDDEN + HIDDEN * HEAD_PAD)
    bytes_accessed = (
        b_pad * F * x_itemsize
        + (F * HIDDEN + 2 * HIDDEN * HIDDEN + HIDDEN * HEAD_PAD) * bf16
        + (3 * HIDDEN + HEAD_PAD) * 4
        + b_pad * HEAD_PAD * 4)

    q = pl.pallas_call(
        qnet_kernel,
        grid=grid,
        in_specs=[
            pl.BlockSpec((tb, F), lambda i: (i, 0)),                # x, batch-tiled
            w1_spec, resident((1, HIDDEN)),                         # fc1
            resident((HIDDEN, HIDDEN)), resident((1, HIDDEN)),      # fc2
            resident((HIDDEN, HIDDEN)), resident((1, HIDDEN)),      # fc3
            resident((HIDDEN, HEAD_PAD)), resident((1, HEAD_PAD)),  # fc4 (lane-dense)
        ],
        out_specs=pl.BlockSpec((tb, HEAD_PAD), lambda i: (i, 0)),
        out_shape=jax.ShapeDtypeStruct((b_pad, HEAD_PAD), jnp.float32),
        compiler_params=pltpu.CompilerParams(**cp_kwargs),
        cost_estimate=pl.CostEstimate(flops=flops, transcendentals=0,
                                      bytes_accessed=bytes_accessed),
    )(x_in,
      params["w1"], params["b1"],
      params["w2"], params["b2"],
      params["w3"], params["b3"],
      w4, b4)
    return q[:B, :N_ACTIONS]


def init_params(key, feature):
    """Mimics PyTorch Linear default init (U[-1/sqrt(fan_in), 1/sqrt(fan_in)]).

    Weights stored bf16 (halves weight DMA bytes), biases stay f32.
    """
    def linear(k, fan_in, fan_out):
        kw, kb = jax.random.split(k)
        bound = 1.0 / np.sqrt(fan_in)
        w = jax.random.uniform(kw, (fan_in, fan_out), jnp.float32, -bound, bound)
        b = jax.random.uniform(kb, (1, fan_out), jnp.float32, -bound, bound)
        return w.astype(jnp.bfloat16), b

    k1, k2, k3, k4 = jax.random.split(key, 4)
    w1, b1 = linear(k1, feature, HIDDEN)
    w2, b2 = linear(k2, HIDDEN, HIDDEN)
    w3, b3 = linear(k3, HIDDEN, HIDDEN)
    w4, b4 = linear(k4, HIDDEN, N_ACTIONS)
    return dict(w1=w1, b1=b1, w2=w2, b2=b2, w3=w3, b3=b3, w4=w4, b4=b4)


def reference_forward_bf16(x, p):
    """Pure-JAX reference using the kernel's bf16-operand / f32-accumulate recipe."""
    h = x.astype(jnp.bfloat16)
    for wk, bk in (("w1", "b1"), ("w2", "b2"), ("w3", "b3")):
        h = jnp.dot(h, p[wk], preferred_element_type=jnp.float32) + p[bk]
        h = jnp.maximum(h, 0.0).astype(jnp.bfloat16)
    return jnp.dot(h, p["w4"], preferred_element_type=jnp.float32) + p["b4"]


def reference_forward_f32(x, p):
    """Full-f32 math (what the PyTorch Qnet computes, modulo bf16 weight storage)."""
    h = x.astype(jnp.float32)
    for wk, bk in (("w1", "b1"), ("w2", "b2"), ("w3", "b3")):
        h = jnp.maximum(jnp.dot(h, p[wk].astype(jnp.float32)) + p[bk], 0.0)
    return jnp.dot(h, p["w4"].astype(jnp.float32)) + p["b4"]


if __name__ == "__main__":
    key = jax.random.PRNGKey(0)
    k_x, k_x2, k_p = jax.random.split(key, 3)

    feature = 32
    params = init_params(k_p, feature)

    # Case 1: small batch + forced tiny tile -> exercises batch padding
    # (20 -> 24), a 3-step grid with VMEM-resident weights, and the
    # lane-dense (128 -> 21) head slice.
    x1 = jax.random.normal(k_x, (20, feature), jnp.float32)
    q1 = jax.block_until_ready(qnet_forward(x1, params, tile_b=8))
    np.testing.assert_allclose(np.asarray(q1),
                               np.asarray(reference_forward_bf16(x1, params)),
                               rtol=1e-3, atol=1e-3)
    # Loose check against full-f32 math to bound the bf16-activation error.
    np.testing.assert_allclose(np.asarray(q1),
                               np.asarray(reference_forward_f32(x1, params)),
                               rtol=1e-1, atol=1e-1)

    # Case 2: batch=512 with default tiling -> tb=256, 2-step "parallel" grid
    # (feeds both TensorCores on v7x; identical math on v5e/v6e).
    x2 = jax.random.normal(k_x2, (512, feature), jnp.float32)
    q2 = jax.block_until_ready(qnet_forward(x2, params))
    np.testing.assert_allclose(np.asarray(q2),
                               np.asarray(reference_forward_bf16(x2, params)),
                               rtol=1e-3, atol=1e-3)

    print("KERNEL_OK")
</pallas_src>

<mosaic_0001>
module attributes {stable_mosaic.version = 11 : i64} {
  func.func @qnet_kernel(%arg0: i32, %arg1: memref<8x32xf32, #tpu.memory_space<vmem>>, %arg2: memref<32x512xbf16, #tpu.memory_space<vmem>>, %arg3: memref<1x512xf32, #tpu.memory_space<vmem>>, %arg4: memref<512x512xbf16, #tpu.memory_space<vmem>>, %arg5: memref<1x512xf32, #tpu.memory_space<vmem>>, %arg6: memref<512x512xbf16, #tpu.memory_space<vmem>>, %arg7: memref<1x512xf32, #tpu.memory_space<vmem>>, %arg8: memref<512x128xbf16, #tpu.memory_space<vmem>>, %arg9: memref<1x128xf32, #tpu.memory_space<vmem>>, %arg10: memref<8x128xf32, #tpu.memory_space<vmem>>) attributes {dimension_semantics = [#tpu.dimension_semantics<parallel>], iteration_bounds = array<i64: 3>, scalar_prefetch = 0 : i64, scratch_operands = 0 : i64, tpu.core_type = #tpu.core_type<tc>, window_params = [{transform_indices = @transform_0, window_bounds = array<i64: 8, 32>}, {pipeline_mode = #tpu.pipeline_mode<synchronous>, transform_indices = @transform_1, window_bounds = array<i64: 32, 512>}, {pipeline_mode = #tpu.pipeline_mode<synchronous>, transform_indices = @transform_2, window_bounds = array<i64: 1, 512>}, {pipeline_mode = #tpu.pipeline_mode<synchronous>, transform_indices = @transform_3, window_bounds = array<i64: 512, 512>}, {pipeline_mode = #tpu.pipeline_mode<synchronous>, transform_indices = @transform_4, window_bounds = array<i64: 1, 512>}, {pipeline_mode = #tpu.pipeline_mode<synchronous>, transform_indices = @transform_5, window_bounds = array<i64: 512, 512>}, {pipeline_mode = #tpu.pipeline_mode<synchronous>, transform_indices = @transform_6, window_bounds = array<i64: 1, 512>}, {pipeline_mode = #tpu.pipeline_mode<synchronous>, transform_indices = @transform_7, window_bounds = array<i64: 512, 128>}, {pipeline_mode = #tpu.pipeline_mode<synchronous>, transform_indices = @transform_8, window_bounds = array<i64: 1, 128>}, {transform_indices = @transform_9, window_bounds = array<i64: 8, 128>}]} {
    %c0 = arith.constant 0 : index
    %c0_0 = arith.constant 0 : index
    %0 = vector.load %arg1[%c0, %c0_0] : memref<8x32xf32, #tpu.memory_space<vmem>>, vector<8x32xf32>
    %1 = arith.truncf %0 : vector<8x32xf32> to vector<8x32xbf16>
    %c0_1 = arith.constant 0 : index
    %c0_2 = arith.constant 0 : index
    %2 = vector.load %arg2[%c0_1, %c0_2] : memref<32x512xbf16, #tpu.memory_space<vmem>>, vector<32x512xbf16>
    %cst = arith.constant dense<0.000000e+00> : vector<8x512xf32>
    %3 = tpu.matmul %1, %2, %cst {dimension_numbers = #tpu.dot_dimension_numbers<[1], [0], [0], [1], [0, 0, 1, 1], [], []>} : vector<8x32xbf16>, vector<32x512xbf16>, vector<8x512xf32> -> vector<8x512xf32>
    %c0_3 = arith.constant 0 : index
    %c0_4 = arith.constant 0 : index
    %4 = vector.load %arg3[%c0_3, %c0_4] : memref<1x512xf32, #tpu.memory_space<vmem>>, vector<1x512xf32>
    %5 = vector.broadcast %4 : vector<1x512xf32> to vector<8x512xf32>
    %6 = arith.addf %3, %5 : vector<8x512xf32>
    %cst_5 = arith.constant 0.000000e+00 : f32
    %7 = vector.broadcast %cst_5 : f32 to vector<8x512xf32>
    %8 = arith.maximumf %6, %7 : vector<8x512xf32>
    %9 = arith.truncf %8 : vector<8x512xf32> to vector<8x512xbf16>
    %c0_6 = arith.constant 0 : index
    %c0_7 = arith.constant 0 : index
    %10 = vector.load %arg4[%c0_6, %c0_7] : memref<512x512xbf16, #tpu.memory_space<vmem>>, vector<512x512xbf16>
    %cst_8 = arith.constant dense<0.000000e+00> : vector<8x512xf32>
    %11 = tpu.matmul %9, %10, %cst_8 {dimension_numbers = #tpu.dot_dimension_numbers<[1], [0], [0], [1], [0, 0, 1, 1], [], []>} : vector<8x512xbf16>, vector<512x512xbf16>, vector<8x512xf32> -> vector<8x512xf32>
    %c0_9 = arith.constant 0 : index
    %c0_10 = arith.constant 0 : index
    %12 = vector.load %arg5[%c0_9, %c0_10] : memref<1x512xf32, #tpu.memory_space<vmem>>, vector<1x512xf32>
    %13 = vector.broadcast %12 : vector<1x512xf32> to vector<8x512xf32>
    %14 = arith.addf %11, %13 : vector<8x512xf32>
    %cst_11 = arith.constant 0.000000e+00 : f32
    %15 = vector.broadcast %cst_11 : f32 to vector<8x512xf32>
    %16 = arith.maximumf %14, %15 : vector<8x512xf32>
    %17 = arith.truncf %16 : vector<8x512xf32> to vector<8x512xbf16>
    %c0_12 = arith.constant 0 : index
    %c0_13 = arith.constant 0 : index
    %18 = vector.load %arg6[%c0_12, %c0_13] : memref<512x512xbf16, #tpu.memory_space<vmem>>, vector<512x512xbf16>
    %cst_14 = arith.constant dense<0.000000e+00> : vector<8x512xf32>
    %19 = tpu.matmul %17, %18, %cst_14 {dimension_numbers = #tpu.dot_dimension_numbers<[1], [0], [0], [1], [0, 0, 1, 1], [], []>} : vector<8x512xbf16>, vector<512x512xbf16>, vector<8x512xf32> -> vector<8x512xf32>
    %c0_15 = arith.constant 0 : index
    %c0_16 = arith.constant 0 : index
    %20 = vector.load %arg7[%c0_15, %c0_16] : memref<1x512xf32, #tpu.memory_space<vmem>>, vector<1x512xf32>
    %21 = vector.broadcast %20 : vector<1x512xf32> to vector<8x512xf32>
    %22 = arith.addf %19, %21 : vector<8x512xf32>
    %cst_17 = arith.constant 0.000000e+00 : f32
    %23 = vector.broadcast %cst_17 : f32 to vector<8x512xf32>
    %24 = arith.maximumf %22, %23 : vector<8x512xf32>
    %25 = arith.truncf %24 : vector<8x512xf32> to vector<8x512xbf16>
    %c0_18 = arith.constant 0 : index
    %c0_19 = arith.constant 0 : index
    %26 = vector.load %arg8[%c0_18, %c0_19] : memref<512x128xbf16, #tpu.memory_space<vmem>>, vector<512x128xbf16>
    %cst_20 = arith.constant dense<0.000000e+00> : vector<8x128xf32>
    %27 = tpu.matmul %25, %26, %cst_20 {dimension_numbers = #tpu.dot_dimension_numbers<[1], [0], [0], [1], [0, 0, 1, 1], [], []>} : vector<8x512xbf16>, vector<512x128xbf16>, vector<8x128xf32> -> vector<8x128xf32>
    %c0_21 = arith.constant 0 : index
    %c0_22 = arith.constant 0 : index
    %28 = vector.load %arg9[%c0_21, %c0_22] : memref<1x128xf32, #tpu.memory_space<vmem>>, vector<1x128xf32>
    %29 = vector.broadcast %28 : vector<1x128xf32> to vector<8x128xf32>
    %30 = arith.addf %27, %29 : vector<8x128xf32>
    %c0_23 = arith.constant 0 : index
    %c0_24 = arith.constant 0 : index
    %31 = vector.load %arg10[%c0_23, %c0_24] : memref<8x128xf32, #tpu.memory_space<vmem>>, vector<8x128xf32>
    tpu.vector_store %arg10[%c0_23, %c0_24], %30 {strides = array<i32>} : memref<8x128xf32, #tpu.memory_space<vmem>>, vector<8x128xf32>,
    return
  }
  func.func @transform_0(%arg0: i32) -> (i32, i32) {
    %c0_i32 = arith.constant 0 : i32
    %c0_i32_0 = arith.constant 0 : i32
    return %arg0, %c0_i32 : i32, i32
  }
  func.func @transform_1(%arg0: i32) -> (i32, i32) {
    %c0_i32 = arith.constant 0 : i32
    %c0_i32_0 = arith.constant 0 : i32
    %c0_i32_1 = arith.constant 0 : i32
    return %c0_i32, %c0_i32_0 : i32, i32
  }
  func.func @transform_2(%arg0: i32) -> (i32, i32) {
    %c0_i32 = arith.constant 0 : i32
    %c0_i32_0 = arith.constant 0 : i32
    %c0_i32_1 = arith.constant 0 : i32
    return %c0_i32, %c0_i32_0 : i32, i32
  }
  func.func @transform_3(%arg0: i32) -> (i32, i32) {
    %c0_i32 = arith.constant 0 : i32
    %c0_i32_0 = arith.constant 0 : i32
    %c0_i32_1 = arith.constant 0 : i32
    return %c0_i32, %c0_i32_0 : i32, i32
  }
  func.func @transform_4(%arg0: i32) -> (i32, i32) {
    %c0_i32 = arith.constant 0 : i32
    %c0_i32_0 = arith.constant 0 : i32
    %c0_i32_1 = arith.constant 0 : i32
    return %c0_i32, %c0_i32_0 : i32, i32
  }
  func.func @transform_5(%arg0: i32) -> (i32, i32) {
    %c0_i32 = arith.constant 0 : i32
    %c0_i32_0 = arith.constant 0 : i32
    %c0_i32_1 = arith.constant 0 : i32
    return %c0_i32, %c0_i32_0 : i32, i32
  }
  func.func @transform_6(%arg0: i32) -> (i32, i32) {
    %c0_i32 = arith.constant 0 : i32
    %c0_i32_0 = arith.constant 0 : i32
    %c0_i32_1 = arith.constant 0 : i32
    return %c0_i32, %c0_i32_0 : i32, i32
  }
  func.func @transform_7(%arg0: i32) -> (i32, i32) {
    %c0_i32 = arith.constant 0 : i32
    %c0_i32_0 = arith.constant 0 : i32
    %c0_i32_1 = arith.constant 0 : i32
    return %c0_i32, %c0_i32_0 : i32, i32
  }
  func.func @transform_8(%arg0: i32) -> (i32, i32) {
    %c0_i32 = arith.constant 0 : i32
    %c0_i32_0 = arith.constant 0 : i32
    %c0_i32_1 = arith.constant 0 : i32
    return %c0_i32, %c0_i32_0 : i32, i32
  }
  func.func @transform_9(%arg0: i32) -> (i32, i32) {
    %c0_i32 = arith.constant 0 : i32
    %c0_i32_0 = arith.constant 0 : i32
    return %arg0, %c0_i32 : i32, i32
  }
}

</mosaic_0001>

<llo_original>
// kernel: tpu_custom_call.1
$region0: #{tpu_custom_call.1}
  #allocation0 [shape = 'u32[]', space=smem, size = 0x4, offset = 0x4, fixed_abs, tag = 'smem constant byte address 0x4 - core index']
  #allocation1 [shape = 'u32[72,128]{1,0:T(1,128)}', space=vmem, size = 0x9000, scoped, tag = 'internal scratch']
  %s0 = inlined_call_operand.hbm [shape: f32[24,32], index: 0, kind: input, shape index: {}]
  %s1 = inlined_call_operand.hbm [shape: bf16[32,512], index: 1, kind: input, shape index: {}]
  %s2 = inlined_call_operand.hbm [shape: f32[1,512], index: 2, kind: input, shape index: {}]
  %s3 = inlined_call_operand.hbm [shape: bf16[512,512], index: 3, kind: input, shape index: {}]
  %s4 = inlined_call_operand.hbm [shape: f32[1,512], index: 4, kind: input, shape index: {}]
  %s5 = inlined_call_operand.hbm [shape: bf16[512,512], index: 5, kind: input, shape index: {}]
  %s6 = inlined_call_operand.vmem [shape: f32[1,512], index: 6, kind: input, shape index: {}]
  %s7 = inlined_call_operand.hbm [shape: bf16[512,128], index: 7, kind: input, shape index: {}]
  %s8 = inlined_call_operand.vmem [shape: f32[1,128], index: 8, kind: input, shape index: {}]
  %s9 = inlined_call_operand.hbm [shape: f32[24,128], index: 9, kind: output, shape index: {}]
  %s10 = sld [smem:[#allocation0]]
  $region97: #{tpu_custom_call.1} parent=0
    _
  %s12 = ssub.s32 1, %s10
  %s13 = scalar_select 0, %s12, %s10
  $region1: #{tpu_custom_call.1} parent=0
    #allocation2 [shape = 'u8[8192]{0}', space=vmem, size = 0x2000, scoped, tag = 'input window, operand 0']
    #allocation3 [shape = 's32[2]{0}', space=sflag, size = 0x8, scoped, tag = 'scoped memory for tpu_custom_call.1']
    #allocation4 [shape = 's32[2]{0}', space=sflag, size = 0x8, scoped, tag = 'scoped memory for tpu_custom_call.1']
    #allocation5 [shape = 'u8[32768]{0}', space=vmem, size = 0x8000, scoped, tag = 'input window, operand 1, single buffered']
    #allocation6 [shape = 's32[1]{0}', space=sflag, size = 0x4, scoped, tag = 'scoped memory for tpu_custom_call.1']
    #allocation7 [shape = 'u8[2048]{0}', space=vmem, size = 0x800, scoped, tag = 'input window, operand 2, single buffered']
    #allocation8 [shape = 'u8[524288]{0}', space=vmem, size = 0x80000, scoped, tag = 'input window, operand 3, single buffered']
    #allocation9 [shape = 's32[1]{0}', space=sflag, size = 0x4, scoped, tag = 'scoped memory for tpu_custom_call.1']
    #allocation10 [shape = 'u8[2048]{0}', space=vmem, size = 0x800, scoped, tag = 'input window, operand 4, single buffered']
    #allocation11 [shape = 'u8[524288]{0}', space=vmem, size = 0x80000, scoped, tag = 'input window, operand 5, single buffered']
    #allocation12 [shape = 's32[1]{0}', space=sflag, size = 0x4, scoped, tag = 'scoped memory for tpu_custom_call.1']
    #allocation13 [shape = 'u8[131072]{0}', space=vmem, size = 0x20000, scoped, tag = 'input window, operand 7, single buffered']
    #allocation14 [shape = 'u8[8192]{0}', space=vmem, size = 0x2000, scoped, tag = 'output window, operand 0']
    %14 = vsyncpa [#allocation3], 0
    %s15 = scalar_lea.sflag [#allocation3], 1
    %16 = vsyncpa %s15, 0
    %17 = vsyncpa [#allocation6], 0
    %18 = vsyncpa [#allocation9], 0
    %19 = vsyncpa [#allocation12], 0
    %20 = vsyncpa [#allocation4], 0
    %s21 = scalar_lea.sflag [#allocation4], 1
    %22 = vsyncpa %s21, 0
    loop: start=0, step=1, limit=5
    $region2: #{tpu_custom_call.1} parent=1 // loop_pre_header
      _
    $region3: #{tpu_custom_call.1} parent=1 // loop_header
      %s24 = sphi 0, %s28
      %p25 = scmp.ge.s32.totalorder %s24, 5
      %s34 = sphi 0, %s36
      %s37 = sphi 0, %s34
      %s38 = sphi 0, %s37
      %s54 = sphi 0, %s38
      %s58 = sphi 0, %s58
      %s60 = sphi 0, %s58
      %s61 = sphi 0, %s60
      %s75 = sphi 0, %s61
      %s79 = sphi 0, %s79
      %s81 = sphi 0, %s79
      %s82 = sphi 0, %s81
      %s96 = sphi 0, %s82
      %s100 = sphi 0, %s100
      %s102 = sphi 0, %s100
      %s103 = sphi 0, %s102
      %s117 = sphi 0, %s103
      %s121 = sphi 0, %s121
      %s123 = sphi 0, %s121
      %s124 = sphi 0, %s123
      %s138 = sphi 0, %s124
      %s142 = sphi 0, %s142
      %s144 = sphi 0, %s142
      %s145 = sphi 0, %s144
      %s159 = sphi 0, %s145
      %s163 = sphi 0, %s163
      %s165 = sphi 0, %s163
      %s166 = sphi 0, %s165
      %s180 = sphi 0, %s166
      %s184 = sphi 0, %s184
      %s186 = sphi 0, %s184
      %s187 = sphi 0, %s186
      %s201 = sphi 0, %s187
      %s205 = sphi 0, %s205
      %s207 = sphi 0, %s205
      %s208 = sphi 0, %s207
      %s222 = sphi 0, %s208
      %s228 = sphi 0, %s230
      %s231 = sphi 0, %s228
      %s232 = sphi 0, %s231
      %s248 = sphi 0, %s232
    $region4: #{tpu_custom_call.1} parent=1 // loop_header_branch
      %27 = sbr.rel (%p25) target = $region8
    $region5: #{tpu_custom_call.1} parent=1 // loop_body
      %s29 = ssub.s32 %s24, 1
      %s30 = ssub.s32 %s24, 2
      %s31 = sadd.s32 %s24, 1
      %s32 = ssub.s32 %s24, %s31
      %p33 = scmp.eq.s32.totalorder %s32, 0
      %s35 = sadd.s32 %s34, 1
      %s36 = scalar_select %p33, %s34, %s35
      %p39 = pneg %p33
      %p40 = scmp.eq.s32.totalorder %s24, 2
      %p41 = por %p39, %p40
      %p42 = scmp.ne.s32.totalorder %s34, %s37
      %p43 = scmp.eq.s32.totalorder %s24, 0
      %p44 = por %p42, %p43
      %p45 = scmp.ne.s32.totalorder %s34, %s37
      %p46 = scmp.eq.s32.totalorder %s29, 2
      %p47 = por %p45, %p46
      %p48 = scmp.ne.s32.totalorder %s37, %s38
      %p49 = scmp.eq.s32.totalorder %s29, 0
      %p50 = por %p48, %p49
      %p51 = scmp.ne.s32.totalorder %s37, %s38
      %p52 = scmp.eq.s32.totalorder %s30, 2
      %p53 = por %p51, %p52
      %p55 = scmp.ne.s32.totalorder %s38, %s54
      %p56 = scmp.eq.s32.totalorder %s30, 0
      %p57 = por %p55, %p56
      %s59 = sadd.s32 %s58, 1
      %p62 = scmp.eq.s32.totalorder %s24, 2
      %p63 = scmp.ne.s32.totalorder %s58, %s60
      %p64 = scmp.eq.s32.totalorder %s24, 0
      %p65 = por %p63, %p64
      %p66 = scmp.ne.s32.totalorder %s58, %s60
      %p67 = scmp.eq.s32.totalorder %s29, 2
      %p68 = por %p66, %p67
      %p69 = scmp.ne.s32.totalorder %s60, %s61
      %p70 = scmp.eq.s32.totalorder %s29, 0
      %p71 = por %p69, %p70
      %p72 = scmp.ne.s32.totalorder %s60, %s61
      %p73 = scmp.eq.s32.totalorder %s30, 2
      %p74 = por %p72, %p73
      %p76 = scmp.ne.s32.totalorder %s61, %s75
      %p77 = scmp.eq.s32.totalorder %s30, 0
      %p78 = por %p76, %p77
      %s80 = sadd.s32 %s79, 1
      %p83 = scmp.eq.s32.totalorder %s24, 2
      %p84 = scmp.ne.s32.totalorder %s79, %s81
      %p85 = scmp.eq.s32.totalorder %s24, 0
      %p86 = por %p84, %p85
      %p87 = scmp.ne.s32.totalorder %s79, %s81
      %p88 = scmp.eq.s32.totalorder %s29, 2
      %p89 = por %p87, %p88
      %p90 = scmp.ne.s32.totalorder %s81, %s82
      %p91 = scmp.eq.s32.totalorder %s29, 0
      %p92 = por %p90, %p91
      %p93 = scmp.ne.s32.totalorder %s81, %s82
      %p94 = scmp.eq.s32.totalorder %s30, 2
      %p95 = por %p93, %p94
      %p97 = scmp.ne.s32.totalorder %s82, %s96
      %p98 = scmp.eq.s32.totalorder %s30, 0
      %p99 = por %p97, %p98
      %s101 = sadd.s32 %s100, 1
      %p104 = scmp.eq.s32.totalorder %s24, 2
      %p105 = scmp.ne.s32.totalorder %s100, %s102
      %p106 = scmp.eq.s32.totalorder %s24, 0
      %p107 = por %p105, %p106
      %p108 = scmp.ne.s32.totalorder %s100, %s102
      %p109 = scmp.eq.s32.totalorder %s29, 2
      %p110 = por %p108, %p109
      %p111 = scmp.ne.s32.totalorder %s102, %s103
      %p112 = scmp.eq.s32.totalorder %s29, 0
      %p113 = por %p111, %p112
      %p114 = scmp.ne.s32.totalorder %s102, %s103
      %p115 = scmp.eq.s32.totalorder %s30, 2
      %p116 = por %p114, %p115
      %p118 = scmp.ne.s32.totalorder %s103, %s117
      %p119 = scmp.eq.s32.totalorder %s30, 0
      %p120 = por %p118, %p119
      %s122 = sadd.s32 %s121, 1
      %p125 = scmp.eq.s32.totalorder %s24, 2
      %p126 = scmp.ne.s32.totalorder %s121, %s123
      %p127 = scmp.eq.s32.totalorder %s24, 0
      %p128 = por %p126, %p127
      %p129 = scmp.ne.s32.totalorder %s121, %s123
      %p130 = scmp.eq.s32.totalorder %s29, 2
      %p131 = por %p129, %p130
      %p132 = scmp.ne.s32.totalorder %s123, %s124
      %p133 = scmp.eq.s32.totalorder %s29, 0
      %p134 = por %p132, %p133
      %p135 = scmp.ne.s32.totalorder %s123, %s124
      %p136 = scmp.eq.s32.totalorder %s30, 2
      %p137 = por %p135, %p136
      %p139 = scmp.ne.s32.totalorder %s124, %s138
      %p140 = scmp.eq.s32.totalorder %s30, 0
      %p141 = por %p139, %p140
      %s143 = sadd.s32 %s142, 1
      %p146 = scmp.eq.s32.totalorder %s24, 2
      %p147 = scmp.ne.s32.totalorder %s142, %s144
      %p148 = scmp.eq.s32.totalorder %s24, 0
      %p149 = por %p147, %p148
      %p150 = scmp.ne.s32.totalorder %s142, %s144
      %p151 = scmp.eq.s32.totalorder %s29, 2
      %p152 = por %p150, %p151
      %p153 = scmp.ne.s32.totalorder %s144, %s145
      %p154 = scmp.eq.s32.totalorder %s29, 0
      %p155 = por %p153, %p154
      %p156 = scmp.ne.s32.totalorder %s144, %s145
      %p157 = scmp.eq.s32.totalorder %s30, 2
      %p158 = por %p156, %p157
      %p160 = scmp.ne.s32.totalorder %s145, %s159
      %p161 = scmp.eq.s32.totalorder %s30, 0
      %p162 = por %p160, %p161
      %s164 = sadd.s32 %s163, 1
      %p167 = scmp.eq.s32.totalorder %s24, 2
      %p168 = scmp.ne.s32.totalorder %s163, %s165
      %p169 = scmp.eq.s32.totalorder %s24, 0
      %p170 = por %p168, %p169
      %p171 = scmp.ne.s32.totalorder %s163, %s165
      %p172 = scmp.eq.s32.totalorder %s29, 2
      %p173 = por %p171, %p172
      %p174 = scmp.ne.s32.totalorder %s165, %s166
      %p175 = scmp.eq.s32.totalorder %s29, 0
      %p176 = por %p174, %p175
      %p177 = scmp.ne.s32.totalorder %s165, %s166
      %p178 = scmp.eq.s32.totalorder %s30, 2
      %p179 = por %p177, %p178
      %p181 = scmp.ne.s32.totalorder %s166, %s180
      %p182 = scmp.eq.s32.totalorder %s30, 0
      %p183 = por %p181, %p182
      %s185 = sadd.s32 %s184, 1
      %p188 = scmp.eq.s32.totalorder %s24, 2
      %p189 = scmp.ne.s32.totalorder %s184, %s186
      %p190 = scmp.eq.s32.totalorder %s24, 0
      %p191 = por %p189, %p190
      %p192 = scmp.ne.s32.totalorder %s184, %s186
      %p193 = scmp.eq.s32.totalorder %s29, 2
      %p194 = por %p192, %p193
      %p195 = scmp.ne.s32.totalorder %s186, %s187
      %p196 = scmp.eq.s32.totalorder %s29, 0
      %p197 = por %p195, %p196
      %p198 = scmp.ne.s32.totalorder %s186, %s187
      %p199 = scmp.eq.s32.totalorder %s30, 2
      %p200 = por %p198, %p199
      %p202 = scmp.ne.s32.totalorder %s187, %s201
      %p203 = scmp.eq.s32.totalorder %s30, 0
      %p204 = por %p202, %p203
      %s206 = sadd.s32 %s205, 1
      %p209 = scmp.eq.s32.totalorder %s24, 2
      %p210 = scmp.ne.s32.totalorder %s205, %s207
      %p211 = scmp.eq.s32.totalorder %s24, 0
      %p212 = por %p210, %p211
      %p213 = scmp.ne.s32.totalorder %s205, %s207
      %p214 = scmp.eq.s32.totalorder %s29, 2
      %p215 = por %p213, %p214
      %p216 = scmp.ne.s32.totalorder %s207, %s208
      %p217 = scmp.eq.s32.totalorder %s29, 0
      %p218 = por %p216, %p217
      %p219 = scmp.ne.s32.totalorder %s207, %s208
      %p220 = scmp.eq.s32.totalorder %s30, 2
      %p221 = por %p219, %p220
      %p223 = scmp.ne.s32.totalorder %s208, %s222
      %p224 = scmp.eq.s32.totalorder %s30, 0
      %p225 = por %p223, %p224
      %s226 = ssub.s32 %s24, %s31
      %p227 = scmp.eq.s32.totalorder %s226, 0
      %s229 = sadd.s32 %s228, 1
      %s230 = scalar_select %p227, %s228, %s229
      %p233 = pneg %p227
      %p234 = scmp.eq.s32.totalorder %s24, 2
      %p235 = por %p233, %p234
      %p236 = scmp.ne.s32.totalorder %s228, %s231
      %p237 = scmp.eq.s32.totalorder %s24, 0
      %p238 = por %p236, %p237
      %p239 = scmp.ne.s32.totalorder %s228, %s231
      %p240 = scmp.eq.s32.totalorder %s29, 2
      %p241 = por %p239, %p240
      %p242 = scmp.ne.s32.totalorder %s231, %s232
      %p243 = scmp.eq.s32.totalorder %s29, 0
      %p244 = por %p242, %p243
      %p245 = scmp.ne.s32.totalorder %s231, %s232
      %p246 = scmp.eq.s32.totalorder %s30, 2
      %p247 = por %p245, %p246
      %p249 = scmp.ne.s32.totalorder %s232, %s248
      %p250 = scmp.eq.s32.totalorder %s30, 0
      %p251 = por %p249, %p250
      %p252 = scmp.le.s32.totalorder 1, %s24
      %p253 = scmp.lt.s32.totalorder %s24, 4
      %p254 = pnand %p252, %p253
      %p255 = pneg %p254
      // Predicated region
      $region9: #{tpu_custom_call.1} parent=5 // pred_check
        _
      $region10: #{tpu_custom_call.1} parent=5 // pred_check_branch
        %257 = sbr.rel (%p254) target = $region12
      $region11: #{tpu_custom_call.1} parent=5 // pred_region
        %s258 = ssub.s32 %s24, 1
        // Predicated region
        $region13: #{tpu_custom_call.1} parent=11 // pred_check
          %p259 = pneg %p71
        $region14: #{tpu_custom_call.1} parent=11 // pred_check_branch
          %261 = sbr.rel (%p259) target = $region16
        $region15: #{tpu_custom_call.1} parent=11 // pred_region
          %263 = vsyncadd [#allocation6], 0
          %s264 = sshll.u32 %s1, 4
          %s265 = int_to_ptr.hbm [resolvable:$true] %s264
          %s266 = sshll.u32 [#allocation5], 4
          %s267 = int_to_ptr.vmem [resolvable:$true] %s266
          %272 = dma.hbm_to_vmem [thread:$0]  %s265, 1024, %s267, [#allocation6], 256, 256, 16
        $region16: #{tpu_custom_call.1} parent=11 // pred_fallthru
          _
        // Predicated region
        $region17: #{tpu_custom_call.1} parent=11 // pred_check
          %p273 = pneg %p92
        $region18: #{tpu_custom_call.1} parent=11 // pred_check_branch
          %275 = sbr.rel (%p273) target = $region20
        $region19: #{tpu_custom_call.1} parent=11 // pred_region
          %277 = vsyncadd [#allocation6], 0
          %s279 = sshll.u32 %s2, 4
          %s280 = int_to_ptr.hbm [resolvable:$true] %s279
          %s281 = sshll.u32 [#allocation7], 4
          %s282 = int_to_ptr.vmem [resolvable:$true] %s281
          %284 = dma.hbm_to_vmem [thread:$0]  %s280, 64, %s282, [#allocation6]
        $region20: #{tpu_custom_call.1} parent=11 // pred_fallthru
          _
        // Predicated region
        $region21: #{tpu_custom_call.1} parent=11 // pred_check
          %p285 = pneg %p113
        $region22: #{tpu_custom_call.1} parent=11 // pred_check_branch
          %287 = sbr.rel (%p285) target = $region24
        $region23: #{tpu_custom_call.1} parent=11 // pred_region
          %289 = vsyncadd [#allocation9], 0
          %s290 = sshll.u32 %s3, 4
          %s291 = int_to_ptr.hbm [resolvable:$true] %s290
          %s292 = sshll.u32 [#allocation8], 4
          %s293 = int_to_ptr.vmem [resolvable:$true] %s292
          %298 = dma.hbm_to_vmem [thread:$0]  %s291, 16384, %s293, [#allocation9], 256, 256, 16
        $region24: #{tpu_custom_call.1} parent=11 // pred_fallthru
          _
        // Predicated region
        $region25: #{tpu_custom_call.1} parent=11 // pred_check
          %p299 = pneg %p134
        $region26: #{tpu_custom_call.1} parent=11 // pred_check_branch
          %301 = sbr.rel (%p299) target = $region28
        $region27: #{tpu_custom_call.1} parent=11 // pred_region
          %303 = vsyncadd [#allocation9], 0
          %s305 = sshll.u32 %s4, 4
          %s306 = int_to_ptr.hbm [resolvable:$true] %s305
          %s307 = sshll.u32 [#allocation10], 4
          %s308 = int_to_ptr.vmem [resolvable:$true] %s307
          %310 = dma.hbm_to_vmem [thread:$0]  %s306, 64, %s308, [#allocation9]
        $region28: #{tpu_custom_call.1} parent=11 // pred_fallthru
          _
        // Predicated region
        $region29: #{tpu_custom_call.1} parent=11 // pred_check
          %p311 = pneg %p155
        $region30: #{tpu_custom_call.1} parent=11 // pred_check_branch
          %313 = sbr.rel (%p311) target = $region32
        $region31: #{tpu_custom_call.1} parent=11 // pred_region
          %315 = vsyncadd [#allocation12], 0
          %s316 = sshll.u32 %s5, 4
          %s317 = int_to_ptr.hbm [resolvable:$true] %s316
          %s318 = sshll.u32 [#allocation11], 4
          %s319 = int_to_ptr.vmem [resolvable:$true] %s318
          %324 = dma.hbm_to_vmem [thread:$0]  %s317, 16384, %s319, [#allocation12], 256, 256, 16
        $region32: #{tpu_custom_call.1} parent=11 // pred_fallthru
          _
        // Predicated region
        $region33: #{tpu_custom_call.1} parent=11 // pred_check
          %p325 = pneg %p176
        $region34: #{tpu_custom_call.1} parent=11 // pred_check_branch
          %327 = sbr.rel (%p325) target = $region36
        $region35: #{tpu_custom_call.1} parent=11 // pred_region
          _
        $region36: #{tpu_custom_call.1} parent=11 // pred_fallthru
          _
        // Predicated region
        $region37: #{tpu_custom_call.1} parent=11 // pred_check
          %p328 = pneg %p197
        $region38: #{tpu_custom_call.1} parent=11 // pred_check_branch
          %330 = sbr.rel (%p328) target = $region40
        $region39: #{tpu_custom_call.1} parent=11 // pred_region
          %332 = vsyncadd [#allocation12], 0
          %s333 = sshll.u32 %s7, 4
          %s334 = int_to_ptr.hbm [resolvable:$true] %s333
          %s335 = sshll.u32 [#allocation13], 4
          %s336 = int_to_ptr.vmem [resolvable:$true] %s335
          %341 = dma.hbm_to_vmem [thread:$0]  %s334, 4096, %s336, [#allocation12], 64, 64, 4
        $region40: #{tpu_custom_call.1} parent=11 // pred_fallthru
          _
        // Predicated region
        $region41: #{tpu_custom_call.1} parent=11 // pred_check
          %p342 = pneg %p218
        $region42: #{tpu_custom_call.1} parent=11 // pred_check_branch
          %344 = sbr.rel (%p342) target = $region44
        $region43: #{tpu_custom_call.1} parent=11 // pred_region
          _
        $region44: #{tpu_custom_call.1} parent=11 // pred_fallthru
          _
      $region12: #{tpu_custom_call.1} parent=5 // pred_fallthru
        _
      %p345 = scmp.lt.s32.totalorder %s24, 3
      // Predicated region
      $region45: #{tpu_custom_call.1} parent=5 // pred_check
        %p346 = pneg %p345
      $region46: #{tpu_custom_call.1} parent=5 // pred_check_branch
        %348 = sbr.rel (%p346) target = $region48
      $region47: #{tpu_custom_call.1} parent=5 // pred_region
        // Predicated region
        $region49: #{tpu_custom_call.1} parent=47 // pred_check
          %p349 = pneg %p44
        $region50: #{tpu_custom_call.1} parent=47 // pred_check_branch
          %351 = sbr.rel (%p349) target = $region52
        $region51: #{tpu_custom_call.1} parent=47 // pred_region
          %s352 = sand.u32 %s34, 1
          %s353 = scalar_lea.sflag [#allocation3], %s352
          %s354 = sand.u32 %s34, 1
          %s355 = smul.addr %s354, 8
          %s356 = scalar_lea.vmem [#allocation2], %s355
          %358 = vsyncadd %s353, 0
          %s359 = smul.addr %s24, 8
          %s360 = scalar_lea.hbm %s0, %s359
          %s362 = sshll.u32 %s360, 4
          %s363 = int_to_ptr.hbm [resolvable:$true] %s362
          %s364 = sshll.u32 %s356, 4
          %s365 = int_to_ptr.vmem [resolvable:$true] %s364
          %367 = dma.hbm_to_vmem [thread:$0]  %s363, 128, %s365, %s353
        $region52: #{tpu_custom_call.1} parent=47 // pred_fallthru
          _
      $region48: #{tpu_custom_call.1} parent=5 // pred_fallthru
        _
      %p368 = scmp.le.s32.totalorder 1, %s24
      %p369 = scmp.lt.s32.totalorder %s24, 4
      %p370 = pnand %p368, %p369
      %p371 = pneg %p370
      // Predicated region
      $region53: #{tpu_custom_call.1} parent=5 // pred_check
        _
      $region54: #{tpu_custom_call.1} parent=5 // pred_check_branch
        %373 = sbr.rel (%p370) target = $region56
      $region55: #{tpu_custom_call.1} parent=5 // pred_region
        %s374 = ssub.s32 %s24, 1
        %s375 = sand.u32 %s37, 1
        %s376 = scalar_lea.sflag [#allocation3], %s375
        %s377 = sand.u32 %s37, 1
        %s378 = smul.addr %s377, 8
        %s379 = scalar_lea.vmem [#allocation2], %s378
        // Predicated region
        $region57: #{tpu_custom_call.1} parent=55 // pred_check
          %p380 = pneg %p50
        $region58: #{tpu_custom_call.1} parent=55 // pred_check_branch
          %382 = sbr.rel (%p380) target = $region60
        $region59: #{tpu_custom_call.1} parent=55 // pred_region
          %384 = dma.done %s376, 128
        $region60: #{tpu_custom_call.1} parent=55 // pred_fallthru
          _
        // Predicated region
        $region61: #{tpu_custom_call.1} parent=55 // pred_check
          %p385 = pneg %p71
        $region62: #{tpu_custom_call.1} parent=55 // pred_check_branch
          %387 = sbr.rel (%p385) target = $region64
        $region63: #{tpu_custom_call.1} parent=55 // pred_region
          %389 = dma.done [#allocation6], 1024
        $region64: #{tpu_custom_call.1} parent=55 // pred_fallthru
          _
        // Predicated region
        $region65: #{tpu_custom_call.1} parent=55 // pred_check
          %p390 = pneg %p92
        $region66: #{tpu_custom_call.1} parent=55 // pred_check_branch
          %392 = sbr.rel (%p390) target = $region68
        $region67: #{tpu_custom_call.1} parent=55 // pred_region
          %394 = dma.done [#allocation6], 64
        $region68: #{tpu_custom_call.1} parent=55 // pred_fallthru
          _
        // Predicated region
        $region69: #{tpu_custom_call.1} parent=55 // pred_check
          %p395 = pneg %p113
        $region70: #{tpu_custom_call.1} parent=55 // pred_check_branch
          %397 = sbr.rel (%p395) target = $region72
        $region71: #{tpu_custom_call.1} parent=55 // pred_region
          %399 = dma.done [#allocation9], 16384
        $region72: #{tpu_custom_call.1} parent=55 // pred_fallthru
          _
        // Predicated region
        $region73: #{tpu_custom_call.1} parent=55 // pred_check
          %p400 = pneg %p134
        $region74: #{tpu_custom_call.1} parent=55 // pred_check_branch
          %402 = sbr.rel (%p400) target = $region76
        $region75: #{tpu_custom_call.1} parent=55 // pred_region
          %404 = dma.done [#allocation9], 64
        $region76: #{tpu_custom_call.1} parent=55 // pred_fallthru
          _
        // Predicated region
        $region77: #{tpu_custom_call.1} parent=55 // pred_check
          %p405 = pneg %p155
        $region78: #{tpu_custom_call.1} parent=55 // pred_check_branch
          %407 = sbr.rel (%p405) target = $region80
        $region79: #{tpu_custom_call.1} parent=55 // pred_region
          %409 = dma.done [#allocation12], 16384
        $region80: #{tpu_custom_call.1} parent=55 // pred_fallthru
          _
        // Predicated region
        $region81: #{tpu_custom_call.1} parent=55 // pred_check
          %p410 = pneg %p197
        $region82: #{tpu_custom_call.1} parent=55 // pred_check_branch
          %412 = sbr.rel (%p410) target = $region84
        $region83: #{tpu_custom_call.1} parent=55 // pred_region
          %414 = dma.done [#allocation12], 4096
        $region84: #{tpu_custom_call.1} parent=55 // pred_fallthru
          _
        %s415 = sand.u32 %s37, 1
        %s416 = scalar_lea.sflag [#allocation3], %s415
        %s417 = sand.u32 %s37, 1
        %s418 = smul.addr %s417, 8
        %s419 = scalar_lea.vmem [#allocation2], %s418
        %p420 = pneg %p50
        %p421 = pneg %p47
        %p422 = pneg %p71
        %p423 = pneg %p68
        %p424 = pneg %p92
        %p425 = pneg %p89
        %p426 = pneg %p113
        %p427 = pneg %p110
        %p428 = pneg %p134
        %p429 = pneg %p131
        %p430 = pneg %p155
        %p431 = pneg %p152
        %p432 = pneg %p176
        %p433 = pneg %p173
        %p434 = pneg %p197
        %p435 = pneg %p194
        %p436 = pneg %p218
        %p437 = pneg %p215
        %p438 = pneg %p244
        %p439 = pneg %p241
        %s440 = sand.u32 %s231, 1
        %s441 = scalar_lea.sflag [#allocation4], %s440
        %s442 = sand.u32 %s231, 1
        %s443 = smul.addr %s442, 8
        %s444 = scalar_lea.vmem [#allocation14], %s443
        %v446 = vld [vmem:[%s379] sm:$0xff]
        %v447 = vpack.c.bf16 %v446, %v446
        %v448 = vld [vmem:[#allocation5] sm:$0xff]
        %v449 = vld [vmem:[#allocation5 + $0x8] sm:$0xff]
        %v450 = vld [vmem:[#allocation5 + $0x10] sm:$0xff]
        %v451 = vld [vmem:[#allocation5 + $0x18] sm:$0xff]
        %v452 = vld [vmem:[#allocation5 + $0x20] sm:$0xff]
        %v453 = vld [vmem:[#allocation5 + $0x28] sm:$0xff]
        %v454 = vld [vmem:[#allocation5 + $0x30] sm:$0xff]
        %v455 = vld [vmem:[#allocation5 + $0x38] sm:$0xff]
        %v456 = vld [vmem:[#allocation7] sm:$0xf]
        %v458 = vperm.slane %v456, 0
        %v459 = vperm.slane %v456, 1
        %v460 = vperm.slane %v456, 2
        %v461 = vperm.slane %v456, 3
        %v474 = vunpack.c.l.b16 %v448
        %v475 = vunpack.c.h.b16 %v448
        %v476 = vunpack.c.l.b16 %v449
        %v477 = vunpack.c.h.b16 %v449
        %v478 = vunpack.c.l.b16 %v450
        %v479 = vunpack.c.h.b16 %v450
        %v480 = vunpack.c.l.b16 %v451
        %v481 = vunpack.c.h.b16 %v451
        %v482 = vunpack.c.l.b16 %v452
        %v483 = vunpack.c.h.b16 %v452
        %v484 = vunpack.c.l.b16 %v453
        %v485 = vunpack.c.h.b16 %v453
        %v486 = vunpack.c.l.b16 %v454
        %v487 = vunpack.c.h.b16 %v454
        %v488 = vunpack.c.l.b16 %v455
        %v489 = vunpack.c.h.b16 %v455
        %v490 = vpack.c.b16 %v478, %v474
        %v491 = vpack.c.b16 %v479, %v475
        %v492 = vpack.c.b16 %v480, %v476
        %v493 = vpack.c.b16 %v481, %v477
        %v494 = vpack.c.b16 %v486, %v482
        %v495 = vpack.c.b16 %v487, %v483
        %v496 = vpack.c.b16 %v488, %v484
        %v497 = vpack.c.b16 %v489, %v485
        %vm506 = vcmask 261120
        %v508 = vsel %vm506, %v447, 0
        %510 = vmatpush.bf16.msra.mxu0 0
        %511 = vmatpush.bf16.msra.mxu0 0
        %512 = vmatpush.bf16.msra.mxu0 0
        %513 = vmatpush.bf16.msra.mxu0 0
        %514 = vmatpush.bf16.msra.mxu0 0
        %515 = vmatpush.bf16.msra.mxu0 0
        %516 = vmatpush.bf16.msra.mxu0 %v494
        %517 = vmatpush.bf16.msra.mxu0 %v490
        %518 = vmatmul.bf16.gmra.mxu0 %v508
        %v519 = vpop.f32.mrf.mxu0
        %v520 = vadd.f32 %v458, %v519
        %v521 = vpop.f32.mrf.mxu0
        %522 = vdwg.mxu0
        %523 = vmatpush.bf16.msra.mxu0 0
        %524 = vmatpush.bf16.msra.mxu0 0
        %525 = vmatpush.bf16.msra.mxu0 0
        %526 = vmatpush.bf16.msra.mxu0 0
        %527 = vmatpush.bf16.msra.mxu0 0
        %528 = vmatpush.bf16.msra.mxu0 0
        %529 = vmatpush.bf16.msra.mxu0 %v495
        %530 = vmatpush.bf16.msra.mxu0 %v491
        %531 = vmatmul.bf16.gmra.mxu0 %v508
        %v532 = vpop.f32.mrf.mxu0
        %v533 = vadd.f32 %v459, %v532
        %v534 = vpop.f32.mrf.mxu0
        %535 = vdwg.mxu0
        %536 = vmatpush.bf16.msra.mxu0 0
        %537 = vmatpush.bf16.msra.mxu0 0
        %538 = vmatpush.bf16.msra.mxu0 0
        %539 = vmatpush.bf16.msra.mxu0 0
        %540 = vmatpush.bf16.msra.mxu0 0
        %541 = vmatpush.bf16.msra.mxu0 0
        %542 = vmatpush.bf16.msra.mxu0 %v496
        %543 = vmatpush.bf16.msra.mxu0 %v492
        %544 = vmatmul.bf16.gmra.mxu0 %v508
        %v545 = vpop.f32.mrf.mxu0
        %v546 = vadd.f32 %v460, %v545
        %v547 = vpop.f32.mrf.mxu0
        %548 = vdwg.mxu0
        %549 = vmatpush.bf16.msra.mxu0 0
        %550 = vmatpush.bf16.msra.mxu0 0
        %551 = vmatpush.bf16.msra.mxu0 0
        %552 = vmatpush.bf16.msra.mxu0 0
        %553 = vmatpush.bf16.msra.mxu0 0
        %554 = vmatpush.bf16.msra.mxu0 0
        %555 = vmatpush.bf16.msra.mxu0 %v497
        %556 = vmatpush.bf16.msra.mxu0 %v493
        %557 = vmatmul.bf16.gmra.mxu0 %v508
        %v558 = vpop.f32.mrf.mxu0
        %v559 = vadd.f32 %v461, %v558
        %v560 = vpop.f32.mrf.mxu0
        %561 = vdwg.mxu0
        %v562 = vmax.f32 %v520, 0.0
        %v563 = vmax.f32 %v533, 0.0
        %v564 = vmax.f32 %v546, 0.0
        %v565 = vmax.f32 %v559, 0.0
        %v566 = vpack.c.bf16 %v562, %v562
        %v567 = vpack.c.bf16 %v563, %v563
        %v568 = vpack.c.bf16 %v564, %v564
        %v569 = vpack.c.bf16 %v565, %v565
        %v570 = vld [vmem:[#allocation8] sm:$0xff]
        %v571 = vld [vmem:[#allocation8 + $0x8] sm:$0xff]
        %v572 = vld [vmem:[#allocation8 + $0x10] sm:$0xff]
        %v573 = vld [vmem:[#allocation8 + $0x18] sm:$0xff]
        %v574 = vld [vmem:[#allocation8 + $0x20] sm:$0xff]
        %v575 = vld [vmem:[#allocation8 + $0x28] sm:$0xff]
        %v576 = vld [vmem:[#allocation8 + $0x30] sm:$0xff]
        %v577 = vld [vmem:[#allocation8 + $0x38] sm:$0xff]
        %v578 = vld [vmem:[#allocation8 + $0x40] sm:$0xff]
        %v579 = vld [vmem:[#allocation8 + $0x48] sm:$0xff]
        %v580 = vld [vmem:[#allocation8 + $0x50] sm:$0xff]
        %v581 = vld [vmem:[#allocation8 + $0x58] sm:$0xff]
        %v582 = vld [vmem:[#allocation8 + $0x60] sm:$0xff]
        %v583 = vld [vmem:[#allocation8 + $0x68] sm:$0xff]
        %v584 = vld [vmem:[#allocation8 + $0x70] sm:$0xff]
        %v585 = vld [vmem:[#allocation8 + $0x78] sm:$0xff]
        %v586 = vld [vmem:[#allocation8 + $0x80] sm:$0xff]
        %v587 = vld [vmem:[#allocation8 + $0x88] sm:$0xff]
        %v588 = vld [vmem:[#allocation8 + $0x90] sm:$0xff]
        %v589 = vld [vmem:[#allocation8 + $0x98] sm:$0xff]
        %v590 = vld [vmem:[#allocation8 + $0xa0] sm:$0xff]
        %v591 = vld [vmem:[#allocation8 + $0xa8] sm:$0xff]
        %v592 = vld [vmem:[#allocation8 + $0xb0] sm:$0xff]
        %v593 = vld [vmem:[#allocation8 + $0xb8] sm:$0xff]
        %v594 = vld [vmem:[#allocation8 + $0xc0] sm:$0xff]
        %v595 = vld [vmem:[#allocation8 + $0xc8] sm:$0xff]
        %v596 = vld [vmem:[#allocation8 + $0xd0] sm:$0xff]
        %v597 = vld [vmem:[#allocation8 + $0xd8] sm:$0xff]
        %v598 = vld [vmem:[#allocation8 + $0xe0] sm:$0xff]
        %v599 = vld [vmem:[#allocation8 + $0xe8] sm:$0xff]
        %v600 = vld [vmem:[#allocation8 + $0xf0] sm:$0xff]
        %v601 = vld [vmem:[#allocation8 + $0xf8] sm:$0xff]
        %v602 = vld [vmem:[#allocation8 + $0x100] sm:$0xff]
        %v603 = vld [vmem:[#allocation8 + $0x108] sm:$0xff]
        %v604 = vld [vmem:[#allocation8 + $0x110] sm:$0xff]
        %v605 = vld [vmem:[#allocation8 + $0x118] sm:$0xff]
        %v606 = vld [vmem:[#allocation8 + $0x120] sm:$0xff]
        %v607 = vld [vmem:[#allocation8 + $0x128] sm:$0xff]
        %v608 = vld [vmem:[#allocation8 + $0x130] sm:$0xff]
        %v609 = vld [vmem:[#allocation8 + $0x138] sm:$0xff]
        %v610 = vld [vmem:[#allocation8 + $0x140] sm:$0xff]
        %v611 = vld [vmem:[#allocation8 + $0x148] sm:$0xff]
        %v612 = vld [vmem:[#allocation8 + $0x150] sm:$0xff]
        %v613 = vld [vmem:[#allocation8 + $0x158] sm:$0xff]
        %v614 = vld [vmem:[#allocation8 + $0x160] sm:$0xff]
        %v615 = vld [vmem:[#allocation8 + $0x168] sm:$0xff]
        %v616 = vld [vmem:[#allocation8 + $0x170] sm:$0xff]
        %v617 = vld [vmem:[#allocation8 + $0x178] sm:$0xff]
        %v618 = vld [vmem:[#allocation8 + $0x180] sm:$0xff]
        %v619 = vld [vmem:[#allocation8 + $0x188] sm:$0xff]
        %v620 = vld [vmem:[#allocation8 + $0x190] sm:$0xff]
        %v621 = vld [vmem:[#allocation8 + $0x198] sm:$0xff]
        %v622 = vld [vmem:[#allocation8 + $0x1a0] sm:$0xff]
        %v623 = vld [vmem:[#allocation8 + $0x1a8] sm:$0xff]
        %v624 = vld [vmem:[#allocation8 + $0x1b0] sm:$0xff]
        %v625 = vld [vmem:[#allocation8 + $0x1b8] sm:$0xff]
        %v626 = vld [vmem:[#allocation8 + $0x1c0] sm:$0xff]
        %v627 = vld [vmem:[#allocation8 + $0x1c8] sm:$0xff]
        %v628 = vld [vmem:[#allocation8 + $0x1d0] sm:$0xff]
        %v629 = vld [vmem:[#allocation8 + $0x1d8] sm:$0xff]
        %v630 = vld [vmem:[#allocation8 + $0x1e0] sm:$0xff]
        %v631 = vld [vmem:[#allocation8 + $0x1e8] sm:$0xff]
        %v632 = vld [vmem:[#allocation8 + $0x1f0] sm:$0xff]
        %v633 = vld [vmem:[#allocation8 + $0x1f8] sm:$0xff]
        %v634 = vld [vmem:[#allocation8 + $0x200] sm:$0xff]
        %v635 = vld [vmem:[#allocation8 + $0x208] sm:$0xff]
        %v636 = vld [vmem:[#allocation8 + $0x210] sm:$0xff]
        %v637 = vld [vmem:[#allocation8 + $0x218] sm:$0xff]
        %v638 = vld [vmem:[#allocation8 + $0x220] sm:$0xff]
        %v639 = vld [vmem:[#allocation8 + $0x228] sm:$0xff]
        %v640 = vld [vmem:[#allocation8 + $0x230] sm:$0xff]
        %v641 = vld [vmem:[#allocation8 + $0x238] sm:$0xff]
        %v642 = vld [vmem:[#allocation8 + $0x240] sm:$0xff]
        %v643 = vld [vmem:[#allocation8 + $0x248] sm:$0xff]
        %v644 = vld [vmem:[#allocation8 + $0x250] sm:$0xff]
        %v645 = vld [vmem:[#allocation8 + $0x258] sm:$0xff]
        %v646 = vld [vmem:[#allocation8 + $0x260] sm:$0xff]
        %v647 = vld [vmem:[#allocation8 + $0x268] sm:$0xff]
        %v648 = vld [vmem:[#allocation8 + $0x270] sm:$0xff]
        %v649 = vld [vmem:[#allocation8 + $0x278] sm:$0xff]
        %v650 = vld [vmem:[#allocation8 + $0x280] sm:$0xff]
        %v651 = vld [vmem:[#allocation8 + $0x288] sm:$0xff]
        %v652 = vld [vmem:[#allocation8 + $0x290] sm:$0xff]
        %v653 = vld [vmem:[#allocation8 + $0x298] sm:$0xff]
        %v654 = vld [vmem:[#allocation8 + $0x2a0] sm:$0xff]
        %v655 = vld [vmem:[#allocation8 + $0x2a8] sm:$0xff]
        %v656 = vld [vmem:[#allocation8 + $0x2b0] sm:$0xff]
        %v657 = vld [vmem:[#allocation8 + $0x2b8] sm:$0xff]
        %v658 = vld [vmem:[#allocation8 + $0x2c0] sm:$0xff]
        %v659 = vld [vmem:[#allocation8 + $0x2c8] sm:$0xff]
        %v660 = vld [vmem:[#allocation8 + $0x2d0] sm:$0xff]
        %v661 = vld [vmem:[#allocation8 + $0x2d8] sm:$0xff]
        %v662 = vld [vmem:[#allocation8 + $0x2e0] sm:$0xff]
        %v663 = vld [vmem:[#allocation8 + $0x2e8] sm:$0xff]
        %v664 = vld [vmem:[#allocation8 + $0x2f0] sm:$0xff]
        %v665 = vld [vmem:[#allocation8 + $0x2f8] sm:$0xff]
        %v666 = vld [vmem:[#allocation8 + $0x300] sm:$0xff]
        %v667 = vld [vmem:[#allocation8 + $0x308] sm:$0xff]
        %v668 = vld [vmem:[#allocation8 + $0x310] sm:$0xff]
        %v669 = vld [vmem:[#allocation8 + $0x318] sm:$0xff]
        %v670 = vld [vmem:[#allocation8 + $0x320] sm:$0xff]
        %v671 = vld [vmem:[#allocation8 + $0x328] sm:$0xff]
        %v672 = vld [vmem:[#allocation8 + $0x330] sm:$0xff]
        %v673 = vld [vmem:[#allocation8 + $0x338] sm:$0xff]
        %v674 = vld [vmem:[#allocation8 + $0x340] sm:$0xff]
        %v675 = vld [vmem:[#allocation8 + $0x348] sm:$0xff]
        %v676 = vld [vmem:[#allocation8 + $0x350] sm:$0xff]
        %v677 = vld [vmem:[#allocation8 + $0x358] sm:$0xff]
        %v678 = vld [vmem:[#allocation8 + $0x360] sm:$0xff]
        %v679 = vld [vmem:[#allocation8 + $0x368] sm:$0xff]
        %v680 = vld [vmem:[#allocation8 + $0x370] sm:$0xff]
        %v681 = vld [vmem:[#allocation8 + $0x378] sm:$0xff]
        %v682 = vld [vmem:[#allocation8 + $0x380] sm:$0xff]
        %v683 = vld [vmem:[#allocation8 + $0x388] sm:$0xff]
        %v684 = vld [vmem:[#allocation8 + $0x390] sm:$0xff]
        %v685 = vld [vmem:[#allocation8 + $0x398] sm:$0xff]
        %v686 = vld [vmem:[#allocation8 + $0x3a0] sm:$0xff]
        %v687 = vld [vmem:[#allocation8 + $0x3a8] sm:$0xff]
        %v688 = vld [vmem:[#allocation8 + $0x3b0] sm:$0xff]
        %v689 = vld [vmem:[#allocation8 + $0x3b8] sm:$0xff]
        %v690 = vld [vmem:[#allocation8 + $0x3c0] sm:$0xff]
        %v691 = vld [vmem:[#allocation8 + $0x3c8] sm:$0xff]
        %v692 = vld [vmem:[#allocation8 + $0x3d0] sm:$0xff]
        %v693 = vld [vmem:[#allocation8 + $0x3d8] sm:$0xff]
        %v694 = vld [vmem:[#allocation8 + $0x3e0] sm:$0xff]
        %v695 = vld [vmem:[#allocation8 + $0x3e8] sm:$0xff]
        %v696 = vld [vmem:[#allocation8 + $0x3f0] sm:$0xff]
        %v697 = vld [vmem:[#allocation8 + $0x3f8] sm:$0xff]
        %v698 = vld [vmem:[#allocation10] sm:$0xf]
        %v700 = vperm.slane %v698, 0
        %v701 = vperm.slane %v698, 1
        %v702 = vperm.slane %v698, 2
        %v703 = vperm.slane %v698, 3
        %v836 = vunpack.c.l.b16 %v570
        %v837 = vunpack.c.h.b16 %v570
        %v838 = vunpack.c.l.b16 %v571
        %v839 = vunpack.c.h.b16 %v571
        %v840 = vunpack.c.l.b16 %v572
        %v841 = vunpack.c.h.b16 %v572
        %v842 = vunpack.c.l.b16 %v573
        %v843 = vunpack.c.h.b16 %v573
        %v844 = vunpack.c.l.b16 %v574
        %v845 = vunpack.c.h.b16 %v574
        %v846 = vunpack.c.l.b16 %v575
        %v847 = vunpack.c.h.b16 %v575
        %v848 = vunpack.c.l.b16 %v576
        %v849 = vunpack.c.h.b16 %v576
        %v850 = vunpack.c.l.b16 %v577
        %v851 = vunpack.c.h.b16 %v577
        %v852 = vunpack.c.l.b16 %v578
        %v853 = vunpack.c.h.b16 %v578
        %v854 = vunpack.c.l.b16 %v579
        %v855 = vunpack.c.h.b16 %v579
        %v856 = vunpack.c.l.b16 %v580
        %v857 = vunpack.c.h.b16 %v580
        %v858 = vunpack.c.l.b16 %v581
        %v859 = vunpack.c.h.b16 %v581
        %v860 = vunpack.c.l.b16 %v582
        %v861 = vunpack.c.h.b16 %v582
        %v862 = vunpack.c.l.b16 %v583
        %v863 = vunpack.c.h.b16 %v583
        %v864 = vunpack.c.l.b16 %v584
        %v865 = vunpack.c.h.b16 %v584
        %v866 = vunpack.c.l.b16 %v585
        %v867 = vunpack.c.h.b16 %v585
        %v868 = vunpack.c.l.b16 %v586
        %v869 = vunpack.c.h.b16 %v586
        %v870 = vunpack.c.l.b16 %v587
        %v871 = vunpack.c.h.b16 %v587
        %v872 = vunpack.c.l.b16 %v588
        %v873 = vunpack.c.h.b16 %v588
        %v874 = vunpack.c.l.b16 %v589
        %v875 = vunpack.c.h.b16 %v589
        %v876 = vunpack.c.l.b16 %v590
        %v877 = vunpack.c.h.b16 %v590
        %v878 = vunpack.c.l.b16 %v591
        %v879 = vunpack.c.h.b16 %v591
        %v880 = vunpack.c.l.b16 %v592
        %v881 = vunpack.c.h.b16 %v592
        %v882 = vunpack.c.l.b16 %v593
        %v883 = vunpack.c.h.b16 %v593
        %v884 = vunpack.c.l.b16 %v594
        %v885 = vunpack.c.h.b16 %v594
        %v886 = vunpack.c.l.b16 %v595
        %v887 = vunpack.c.h.b16 %v595
        %v888 = vunpack.c.l.b16 %v596
        %v889 = vunpack.c.h.b16 %v596
        %v890 = vunpack.c.l.b16 %v597
        %v891 = vunpack.c.h.b16 %v597
        %v892 = vunpack.c.l.b16 %v598
        %v893 = vunpack.c.h.b16 %v598
        %v894 = vunpack.c.l.b16 %v599
        %v895 = vunpack.c.h.b16 %v599
        %v896 = vunpack.c.l.b16 %v600
        %v897 = vunpack.c.h.b16 %v600
        %v898 = vunpack.c.l.b16 %v601
        %v899 = vunpack.c.h.b16 %v601
        %v900 = vunpack.c.l.b16 %v602
        %v901 = vunpack.c.h.b16 %v602
        %v902 = vunpack.c.l.b16 %v603
        %v903 = vunpack.c.h.b16 %v603
        %v904 = vunpack.c.l.b16 %v604
        %v905 = vunpack.c.h.b16 %v604
        %v906 = vunpack.c.l.b16 %v605
        %v907 = vunpack.c.h.b16 %v605
        %v908 = vunpack.c.l.b16 %v606
        %v909 = vunpack.c.h.b16 %v606
        %v910 = vunpack.c.l.b16 %v607
        %v911 = vunpack.c.h.b16 %v607
        %v912 = vunpack.c.l.b16 %v608
        %v913 = vunpack.c.h.b16 %v608
        %v914 = vunpack.c.l.b16 %v609
        %v915 = vunpack.c.h.b16 %v609
        %v916 = vunpack.c.l.b16 %v610
        %v917 = vunpack.c.h.b16 %v610
        %v918 = vunpack.c.l.b16 %v611
        %v919 = vunpack.c.h.b16 %v611
        %v920 = vunpack.c.l.b16 %v612
        %v921 = vunpack.c.h.b16 %v612
        %v922 = vunpack.c.l.b16 %v613
        %v923 = vunpack.c.h.b16 %v613
        %v924 = vunpack.c.l.b16 %v614
        %v925 = vunpack.c.h.b16 %v614
        %v926 = vunpack.c.l.b16 %v615
        %v927 = vunpack.c.h.b16 %v615
        %v928 = vunpack.c.l.b16 %v616
        %v929 = vunpack.c.h.b16 %v616
        %v930 = vunpack.c.l.b16 %v617
        %v931 = vunpack.c.h.b16 %v617
        %v932 = vunpack.c.l.b16 %v618
        %v933 = vunpack.c.h.b16 %v618
        %v934 = vunpack.c.l.b16 %v619
        %v935 = vunpack.c.h.b16 %v619
        %v936 = vunpack.c.l.b16 %v620
        %v937 = vunpack.c.h.b16 %v620
        %v938 = vunpack.c.l.b16 %v621
        %v939 = vunpack.c.h.b16 %v621
        %v940 = vunpack.c.l.b16 %v622
        %v941 = vunpack.c.h.b16 %v622
        %v942 = vunpack.c.l.b16 %v623
        %v943 = vunpack.c.h.b16 %v623
        %v944 = vunpack.c.l.b16 %v624
        %v945 = vunpack.c.h.b16 %v624
        %v946 = vunpack.c.l.b16 %v625
        %v947 = vunpack.c.h.b16 %v625
        %v948 = vunpack.c.l.b16 %v626
        %v949 = vunpack.c.h.b16 %v626
        %v950 = vunpack.c.l.b16 %v627
        %v951 = vunpack.c.h.b16 %v627
        %v952 = vunpack.c.l.b16 %v628
        %v953 = vunpack.c.h.b16 %v628
        %v954 = vunpack.c.l.b16 %v629
        %v955 = vunpack.c.h.b16 %v629
        %v956 = vunpack.c.l.b16 %v630
        %v957 = vunpack.c.h.b16 %v630
        %v958 = vunpack.c.l.b16 %v631
        %v959 = vunpack.c.h.b16 %v631
        %v960 = vunpack.c.l.b16 %v632
        %v961 = vunpack.c.h.b16 %v632
        %v962 = vunpack.c.l.b16 %v633
        %v963 = vunpack.c.h.b16 %v633
        %v964 = vunpack.c.l.b16 %v634
        %v965 = vunpack.c.h.b16 %v634
        %v966 = vunpack.c.l.b16 %v635
        %v967 = vunpack.c.h.b16 %v635
        %v968 = vunpack.c.l.b16 %v636
        %v969 = vunpack.c.h.b16 %v636
        %v970 = vunpack.c.l.b16 %v637
        %v971 = vunpack.c.h.b16 %v637
        %v972 = vunpack.c.l.b16 %v638
        %v973 = vunpack.c.h.b16 %v638
        %v974 = vunpack.c.l.b16 %v639
        %v975 = vunpack.c.h.b16 %v639
        %v976 = vunpack.c.l.b16 %v640
        %v977 = vunpack.c.h.b16 %v640
        %v978 = vunpack.c.l.b16 %v641
        %v979 = vunpack.c.h.b16 %v641
        %v980 = vunpack.c.l.b16 %v642
        %v981 = vunpack.c.h.b16 %v642
        %v982 = vunpack.c.l.b16 %v643
        %v983 = vunpack.c.h.b16 %v643
        %v984 = vunpack.c.l.b16 %v644
        %v985 = vunpack.c.h.b16 %v644
        %v986 = vunpack.c.l.b16 %v645
        %v987 = vunpack.c.h.b16 %v645
        %v988 = vunpack.c.l.b16 %v646
        %v989 = vunpack.c.h.b16 %v646
        %v990 = vunpack.c.l.b16 %v647
        %v991 = vunpack.c.h.b16 %v647
        %v992 = vunpack.c.l.b16 %v648
        %v993 = vunpack.c.h.b16 %v648
        %v994 = vunpack.c.l.b16 %v649
        %v995 = vunpack.c.h.b16 %v649
        %v996 = vunpack.c.l.b16 %v650
        %v997 = vunpack.c.h.b16 %v650
        %v998 = vunpack.c.l.b16 %v651
        %v999 = vunpack.c.h.b16 %v651
        %v1000 = vunpack.c.l.b16 %v652
        %v1001 = vunpack.c.h.b16 %v652
        %v1002 = vunpack.c.l.b16 %v653
        %v1003 = vunpack.c.h.b16 %v653
        %v1004 = vunpack.c.l.b16 %v654
        %v1005 = vunpack.c.h.b16 %v654
        %v1006 = vunpack.c.l.b16 %v655
        %v1007 = vunpack.c.h.b16 %v655
        %v1008 = vunpack.c.l.b16 %v656
        %v1009 = vunpack.c.h.b16 %v656
        %v1010 = vunpack.c.l.b16 %v657
        %v1011 = vunpack.c.h.b16 %v657
        %v1012 = vunpack.c.l.b16 %v658
        %v1013 = vunpack.c.h.b16 %v658
        %v1014 = vunpack.c.l.b16 %v659
        %v1015 = vunpack.c.h.b16 %v659
        %v1016 = vunpack.c.l.b16 %v660
        %v1017 = vunpack.c.h.b16 %v660
        %v1018 = vunpack.c.l.b16 %v661
        %v1019 = vunpack.c.h.b16 %v661
        %v1020 = vunpack.c.l.b16 %v662
        %v1021 = vunpack.c.h.b16 %v662
        %v1022 = vunpack.c.l.b16 %v663
        %v1023 = vunpack.c.h.b16 %v663
        %v1024 = vunpack.c.l.b16 %v664
        %v1025 = vunpack.c.h.b16 %v664
        %v1026 = vunpack.c.l.b16 %v665
        %v1027 = vunpack.c.h.b16 %v665
        %v1028 = vunpack.c.l.b16 %v666
        %v1029 = vunpack.c.h.b16 %v666
        %v1030 = vunpack.c.l.b16 %v667
        %v1031 = vunpack.c.h.b16 %v667
        %v1032 = vunpack.c.l.b16 %v668
        %v1033 = vunpack.c.h.b16 %v668
        %v1034 = vunpack.c.l.b16 %v669
        %v1035 = vunpack.c.h.b16 %v669
        %v1036 = vunpack.c.l.b16 %v670
        %v1037 = vunpack.c.h.b16 %v670
        %v1038 = vunpack.c.l.b16 %v671
        %v1039 = vunpack.c.h.b16 %v671
        %v1040 = vunpack.c.l.b16 %v672
        %v1041 = vunpack.c.h.b16 %v672
        %v1042 = vunpack.c.l.b16 %v673
        %v1043 = vunpack.c.h.b16 %v673
        %v1044 = vunpack.c.l.b16 %v674
        %v1045 = vunpack.c.h.b16 %v674
        %v1046 = vunpack.c.l.b16 %v675
        %v1047 = vunpack.c.h.b16 %v675
        %v1048 = vunpack.c.l.b16 %v676
        %v1049 = vunpack.c.h.b16 %v676
        %v1050 = vunpack.c.l.b16 %v677
        %v1051 = vunpack.c.h.b16 %v677
        %v1052 = vunpack.c.l.b16 %v678
        %v1053 = vunpack.c.h.b16 %v678
        %v1054 = vunpack.c.l.b16 %v679
        %v1055 = vunpack.c.h.b16 %v679
        %v1056 = vunpack.c.l.b16 %v680
        %v1057 = vunpack.c.h.b16 %v680
        %v1058 = vunpack.c.l.b16 %v681
        %v1059 = vunpack.c.h.b16 %v681
        %v1060 = vunpack.c.l.b16 %v682
        %v1061 = vunpack.c.h.b16 %v682
        %v1062 = vunpack.c.l.b16 %v683
        %v1063 = vunpack.c.h.b16 %v683
        %v1064 = vunpack.c.l.b16 %v684
        %v1065 = vunpack.c.h.b16 %v684
        %v1066 = vunpack.c.l.b16 %v685
        %v1067 = vunpack.c.h.b16 %v685
        %v1068 = vunpack.c.l.b16 %v686
        %v1069 = vunpack.c.h.b16 %v686
        %v1070 = vunpack.c.l.b16 %v687
        %v1071 = vunpack.c.h.b16 %v687
        %v1072 = vunpack.c.l.b16 %v688
        %v1073 = vunpack.c.h.b16 %v688
        %v1074 = vunpack.c.l.b16 %v689
        %v1075 = vunpack.c.h.b16 %v689
        %v1076 = vunpack.c.l.b16 %v690
        %v1077 = vunpack.c.h.b16 %v690
        %v1078 = vunpack.c.l.b16 %v691
        %v1079 = vunpack.c.h.b16 %v691
        %v1080 = vunpack.c.l.b16 %v692
        %v1081 = vunpack.c.h.b16 %v692
        %v1082 = vunpack.c.l.b16 %v693
        %v1083 = vunpack.c.h.b16 %v693
        %v1084 = vunpack.c.l.b16 %v694
        %v1085 = vunpack.c.h.b16 %v694
        %v1086 = vunpack.c.l.b16 %v695
        %v1087 = vunpack.c.h.b16 %v695
        %v1088 = vunpack.c.l.b16 %v696
        %v1089 = vunpack.c.h.b16 %v696
        %v1090 = vunpack.c.l.b16 %v697
        %v1091 = vunpack.c.h.b16 %v697
        %v1092 = vpack.c.b16 %v840, %v836
        %v1093 = vpack.c.b16 %v841, %v837
        %v1094 = vpack.c.b16 %v842, %v838
        %v1095 = vpack.c.b16 %v843, %v839
        %v1096 = vpack.c.b16 %v848, %v844
        %v1097 = vpack.c.b16 %v849, %v845
        %v1098 = vpack.c.b16 %v850, %v846
        %v1099 = vpack.c.b16 %v851, %v847
        %v1100 = vpack.c.b16 %v856, %v852
        %v1101 = vpack.c.b16 %v857, %v853
        %v1102 = vpack.c.b16 %v858, %v854
        %v1103 = vpack.c.b16 %v859, %v855
        %v1104 = vpack.c.b16 %v864, %v860
        %v1105 = vpack.c.b16 %v865, %v861
        %v1106 = vpack.c.b16 %v866, %v862
        %v1107 = vpack.c.b16 %v867, %v863
        %v1108 = vpack.c.b16 %v872, %v868
        %v1109 = vpack.c.b16 %v873, %v869
        %v1110 = vpack.c.b16 %v874, %v870
        %v1111 = vpack.c.b16 %v875, %v871
        %v1112 = vpack.c.b16 %v880, %v876
        %v1113 = vpack.c.b16 %v881, %v877
        %v1114 = vpack.c.b16 %v882, %v878
        %v1115 = vpack.c.b16 %v883, %v879
        %v1116 = vpack.c.b16 %v888, %v884
        %v1117 = vpack.c.b16 %v889, %v885
        %v1118 = vpack.c.b16 %v890, %v886
        %v1119 = vpack.c.b16 %v891, %v887
        %v1120 = vpack.c.b16 %v896, %v892
        %v1121 = vpack.c.b16 %v897, %v893
        %v1122 = vpack.c.b16 %v898, %v894
        %v1123 = vpack.c.b16 %v899, %v895
        %v1124 = vpack.c.b16 %v904, %v900
        %v1125 = vpack.c.b16 %v905, %v901
        %v1126 = vpack.c.b16 %v906, %v902
        %v1127 = vpack.c.b16 %v907, %v903
        %v1128 = vpack.c.b16 %v912, %v908
        %v1129 = vpack.c.b16 %v913, %v909
        %v1130 = vpack.c.b16 %v914, %v910
        %v1131 = vpack.c.b16 %v915, %v911
        %v1132 = vpack.c.b16 %v920, %v916
        %v1133 = vpack.c.b16 %v921, %v917
        %v1134 = vpack.c.b16 %v922, %v918
        %v1135 = vpack.c.b16 %v923, %v919
        %v1136 = vpack.c.b16 %v928, %v924
        %v1137 = vpack.c.b16 %v929, %v925
        %v1138 = vpack.c.b16 %v930, %v926
        %v1139 = vpack.c.b16 %v931, %v927
        %v1140 = vpack.c.b16 %v936, %v932
        %v1141 = vpack.c.b16 %v937, %v933
        %v1142 = vpack.c.b16 %v938, %v934
        %v1143 = vpack.c.b16 %v939, %v935
        %v1144 = vpack.c.b16 %v944, %v940
        %v1145 = vpack.c.b16 %v945, %v941
        %v1146 = vpack.c.b16 %v946, %v942
        %v1147 = vpack.c.b16 %v947, %v943
        %v1148 = vpack.c.b16 %v952, %v948
        %v1149 = vpack.c.b16 %v953, %v949
        %v1150 = vpack.c.b16 %v954, %v950
        %v1151 = vpack.c.b16 %v955, %v951
        %v1152 = vpack.c.b16 %v960, %v956
        %v1153 = vpack.c.b16 %v961, %v957
        %v1154 = vpack.c.b16 %v962, %v958
        %v1155 = vpack.c.b16 %v963, %v959
        %v1156 = vpack.c.b16 %v968, %v964
        %v1157 = vpack.c.b16 %v969, %v965
        %v1158 = vpack.c.b16 %v970, %v966
        %v1159 = vpack.c.b16 %v971, %v967
        %v1160 = vpack.c.b16 %v976, %v972
        %v1161 = vpack.c.b16 %v977, %v973
        %v1162 = vpack.c.b16 %v978, %v974
        %v1163 = vpack.c.b16 %v979, %v975
        %v1164 = vpack.c.b16 %v984, %v980
        %v1165 = vpack.c.b16 %v985, %v981
        %v1166 = vpack.c.b16 %v986, %v982
        %v1167 = vpack.c.b16 %v987, %v983
        %v1168 = vpack.c.b16 %v992, %v988
        %v1169 = vpack.c.b16 %v993, %v989
        %v1170 = vpack.c.b16 %v994, %v990
        %v1171 = vpack.c.b16 %v995, %v991
        %v1172 = vpack.c.b16 %v1000, %v996
        %v1173 = vpack.c.b16 %v1001, %v997
        %v1174 = vpack.c.b16 %v1002, %v998
        %v1175 = vpack.c.b16 %v1003, %v999
        %v1176 = vpack.c.b16 %v1008, %v1004
        %v1177 = vpack.c.b16 %v1009, %v1005
        %v1178 = vpack.c.b16 %v1010, %v1006
        %v1179 = vpack.c.b16 %v1011, %v1007
        %v1180 = vpack.c.b16 %v1016, %v1012
        %v1181 = vpack.c.b16 %v1017, %v1013
        %v1182 = vpack.c.b16 %v1018, %v1014
        %v1183 = vpack.c.b16 %v1019, %v1015
        %v1184 = vpack.c.b16 %v1024, %v1020
        %v1185 = vpack.c.b16 %v1025, %v1021
        %v1186 = vpack.c.b16 %v1026, %v1022
        %v1187 = vpack.c.b16 %v1027, %v1023
        %v1188 = vpack.c.b16 %v1032, %v1028
        %v1189 = vpack.c.b16 %v1033, %v1029
        %v1190 = vpack.c.b16 %v1034, %v1030
        %v1191 = vpack.c.b16 %v1035, %v1031
        %v1192 = vpack.c.b16 %v1040, %v1036
        %v1193 = vpack.c.b16 %v1041, %v1037
        %v1194 = vpack.c.b16 %v1042, %v1038
        %v1195 = vpack.c.b16 %v1043, %v1039
        %v1196 = vpack.c.b16 %v1048, %v1044
        %v1197 = vpack.c.b16 %v1049, %v1045
        %v1198 = vpack.c.b16 %v1050, %v1046
        %v1199 = vpack.c.b16 %v1051, %v1047
        %v1200 = vpack.c.b16 %v1056, %v1052
        %v1201 = vpack.c.b16 %v1057, %v1053
        %v1202 = vpack.c.b16 %v1058, %v1054
        %v1203 = vpack.c.b16 %v1059, %v1055
        %v1204 = vpack.c.b16 %v1064, %v1060
        %v1205 = vpack.c.b16 %v1065, %v1061
        %v1206 = vpack.c.b16 %v1066, %v1062
        %v1207 = vpack.c.b16 %v1067, %v1063
        %v1208 = vpack.c.b16 %v1072, %v1068
        %v1209 = vpack.c.b16 %v1073, %v1069
        %v1210 = vpack.c.b16 %v1074, %v1070
        %v1211 = vpack.c.b16 %v1075, %v1071
        %v1212 = vpack.c.b16 %v1080, %v1076
        %v1213 = vpack.c.b16 %v1081, %v1077
        %v1214 = vpack.c.b16 %v1082, %v1078
        %v1215 = vpack.c.b16 %v1083, %v1079
        %v1216 = vpack.c.b16 %v1088, %v1084
        %v1217 = vpack.c.b16 %v1089, %v1085
        %v1218 = vpack.c.b16 %v1090, %v1086
        %v1219 = vpack.c.b16 %v1091, %v1087
        %1348 = vmatpush.bf16.msra.mxu0 %v1120
        %1349 = vmatpush.bf16.msra.mxu0 %v1116
        %1350 = vmatpush.bf16.msra.mxu0 %v1112
        %1351 = vmatpush.bf16.msra.mxu0 %v1108
        %1352 = vmatpush.bf16.msra.mxu0 %v1104
        %1353 = vmatpush.bf16.msra.mxu0 %v1100
        %1354 = vmatpush.bf16.msra.mxu0 %v1096
        %1355 = vmatpush.bf16.msra.mxu0 %v1092
        %1356 = vmatmul.bf16.gmra.mxu0 %v566
        %v1357 = vpop.f32.mrf.mxu0
        %v1358 = vadd.f32 %v700, %v1357
        %v1359 = vpop.f32.mrf.mxu0
        %1360 = vdwg.mxu0
        %1361 = vmatpush.bf16.msra.mxu0 %v1152
        %1362 = vmatpush.bf16.msra.mxu0 %v1148
        %1363 = vmatpush.bf16.msra.mxu0 %v1144
        %1364 = vmatpush.bf16.msra.mxu0 %v1140
        %1365 = vmatpush.bf16.msra.mxu0 %v1136
        %1366 = vmatpush.bf16.msra.mxu0 %v1132
        %1367 = vmatpush.bf16.msra.mxu0 %v1128
        %1368 = vmatpush.bf16.msra.mxu0 %v1124
        %1369 = vmatmul.bf16.gmra.mxu0 %v567
        %v1370 = vpop.f32.mrf.mxu0
        %v1371 = vadd.f32 %v1358, %v1370
        %v1372 = vpop.f32.mrf.mxu0
        %1373 = vdwg.mxu0
        %1374 = vmatpush.bf16.msra.mxu0 %v1184
        %1375 = vmatpush.bf16.msra.mxu0 %v1180
        %1376 = vmatpush.bf16.msra.mxu0 %v1176
        %1377 = vmatpush.bf16.msra.mxu0 %v1172
        %1378 = vmatpush.bf16.msra.mxu0 %v1168
        %1379 = vmatpush.bf16.msra.mxu0 %v1164
        %1380 = vmatpush.bf16.msra.mxu0 %v1160
        %1381 = vmatpush.bf16.msra.mxu0 %v1156
        %1382 = vmatmul.bf16.gmra.mxu0 %v568
        %v1383 = vpop.f32.mrf.mxu0
        %v1384 = vadd.f32 %v1371, %v1383
        %v1385 = vpop.f32.mrf.mxu0
        %1386 = vdwg.mxu0
        %1387 = vmatpush.bf16.msra.mxu0 %v1216
        %1388 = vmatpush.bf16.msra.mxu0 %v1212
        %1389 = vmatpush.bf16.msra.mxu0 %v1208
        %1390 = vmatpush.bf16.msra.mxu0 %v1204
        %1391 = vmatpush.bf16.msra.mxu0 %v1200
        %1392 = vmatpush.bf16.msra.mxu0 %v1196
        %1393 = vmatpush.bf16.msra.mxu0 %v1192
        %1394 = vmatpush.bf16.msra.mxu0 %v1188
        %1395 = vmatmul.bf16.gmra.mxu0 %v569
        %v1396 = vpop.f32.mrf.mxu0
        %v1397 = vadd.f32 %v1384, %v1396
        %v1398 = vpop.f32.mrf.mxu0
        %1399 = vdwg.mxu0
        %1400 = vmatpush.bf16.msra.mxu0 %v1121
        %1401 = vmatpush.bf16.msra.mxu0 %v1117
        %1402 = vmatpush.bf16.msra.mxu0 %v1113
        %1403 = vmatpush.bf16.msra.mxu0 %v1109
        %1404 = vmatpush.bf16.msra.mxu0 %v1105
        %1405 = vmatpush.bf16.msra.mxu0 %v1101
        %1406 = vmatpush.bf16.msra.mxu0 %v1097
        %1407 = vmatpush.bf16.msra.mxu0 %v1093
        %1408 = vmatmul.bf16.gmra.mxu0 %v566
        %v1409 = vpop.f32.mrf.mxu0
        %v1410 = vadd.f32 %v701, %v1409
        %v1411 = vpop.f32.mrf.mxu0
        %1412 = vdwg.mxu0
        %1413 = vmatpush.bf16.msra.mxu0 %v1153
        %1414 = vmatpush.bf16.msra.mxu0 %v1149
        %1415 = vmatpush.bf16.msra.mxu0 %v1145
        %1416 = vmatpush.bf16.msra.mxu0 %v1141
        %1417 = vmatpush.bf16.msra.mxu0 %v1137
        %1418 = vmatpush.bf16.msra.mxu0 %v1133
        %1419 = vmatpush.bf16.msra.mxu0 %v1129
        %1420 = vmatpush.bf16.msra.mxu0 %v1125
        %1421 = vmatmul.bf16.gmra.mxu0 %v567
        %v1422 = vpop.f32.mrf.mxu0
        %v1423 = vadd.f32 %v1410, %v1422
        %v1424 = vpop.f32.mrf.mxu0
        %1425 = vdwg.mxu0
        %1426 = vmatpush.bf16.msra.mxu0 %v1185
        %1427 = vmatpush.bf16.msra.mxu0 %v1181
        %1428 = vmatpush.bf16.msra.mxu0 %v1177
        %1429 = vmatpush.bf16.msra.mxu0 %v1173
        %1430 = vmatpush.bf16.msra.mxu0 %v1169
        %1431 = vmatpush.bf16.msra.mxu0 %v1165
        %1432 = vmatpush.bf16.msra.mxu0 %v1161
        %1433 = vmatpush.bf16.msra.mxu0 %v1157
        %1434 = vmatmul.bf16.gmra.mxu0 %v568
        %v1435 = vpop.f32.mrf.mxu0
        %v1436 = vadd.f32 %v1423, %v1435
        %v1437 = vpop.f32.mrf.mxu0
        %1438 = vdwg.mxu0
        %1439 = vmatpush.bf16.msra.mxu0 %v1217
        %1440 = vmatpush.bf16.msra.mxu0 %v1213
        %1441 = vmatpush.bf16.msra.mxu0 %v1209
        %1442 = vmatpush.bf16.msra.mxu0 %v1205
        %1443 = vmatpush.bf16.msra.mxu0 %v1201
        %1444 = vmatpush.bf16.msra.mxu0 %v1197
        %1445 = vmatpush.bf16.msra.mxu0 %v1193
        %1446 = vmatpush.bf16.msra.mxu0 %v1189
        %1447 = vmatmul.bf16.gmra.mxu0 %v569
        %v1448 = vpop.f32.mrf.mxu0
        %v1449 = vadd.f32 %v1436, %v1448
        %v1450 = vpop.f32.mrf.mxu0
        %1451 = vdwg.mxu0
        %1452 = vmatpush.bf16.msra.mxu0 %v1122
        %1453 = vmatpush.bf16.msra.mxu0 %v1118
        %1454 = vmatpush.bf16.msra.mxu0 %v1114
        %1455 = vmatpush.bf16.msra.mxu0 %v1110
        %1456 = vmatpush.bf16.msra.mxu0 %v1106
        %1457 = vmatpush.bf16.msra.mxu0 %v1102
        %1458 = vmatpush.bf16.msra.mxu0 %v1098
        %1459 = vmatpush.bf16.msra.mxu0 %v1094
        %1460 = vmatmul.bf16.gmra.mxu0 %v566
        %v1461 = vpop.f32.mrf.mxu0
        %v1462 = vadd.f32 %v702, %v1461
        %v1463 = vpop.f32.mrf.mxu0
        %1464 = vdwg.mxu0
        %1465 = vmatpush.bf16.msra.mxu0 %v1154
        %1466 = vmatpush.bf16.msra.mxu0 %v1150
        %1467 = vmatpush.bf16.msra.mxu0 %v1146
        %1468 = vmatpush.bf16.msra.mxu0 %v1142
        %1469 = vmatpush.bf16.msra.mxu0 %v1138
        %1470 = vmatpush.bf16.msra.mxu0 %v1134
        %1471 = vmatpush.bf16.msra.mxu0 %v1130
        %1472 = vmatpush.bf16.msra.mxu0 %v1126
        %1473 = vmatmul.bf16.gmra.mxu0 %v567
        %v1474 = vpop.f32.mrf.mxu0
        %v1475 = vadd.f32 %v1462, %v1474
        %v1476 = vpop.f32.mrf.mxu0
        %1477 = vdwg.mxu0
        %1478 = vmatpush.bf16.msra.mxu0 %v1186
        %1479 = vmatpush.bf16.msra.mxu0 %v1182
        %1480 = vmatpush.bf16.msra.mxu0 %v1178
        %1481 = vmatpush.bf16.msra.mxu0 %v1174
        %1482 = vmatpush.bf16.msra.mxu0 %v1170
        %1483 = vmatpush.bf16.msra.mxu0 %v1166
        %1484 = vmatpush.bf16.msra.mxu0 %v1162
        %1485 = vmatpush.bf16.msra.mxu0 %v1158
        %1486 = vmatmul.bf16.gmra.mxu0 %v568
        %v1487 = vpop.f32.mrf.mxu0
        %v1488 = vadd.f32 %v1475, %v1487
        %v1489 = vpop.f32.mrf.mxu0
        %1490 = vdwg.mxu0
        %1491 = vmatpush.bf16.msra.mxu0 %v1218
        %1492 = vmatpush.bf16.msra.mxu0 %v1214
        %1493 = vmatpush.bf16.msra.mxu0 %v1210
        %1494 = vmatpush.bf16.msra.mxu0 %v1206
        %1495 = vmatpush.bf16.msra.mxu0 %v1202
        %1496 = vmatpush.bf16.msra.mxu0 %v1198
        %1497 = vmatpush.bf16.msra.mxu0 %v1194
        %1498 = vmatpush.bf16.msra.mxu0 %v1190
        %1499 = vmatmul.bf16.gmra.mxu0 %v569
        %v1500 = vpop.f32.mrf.mxu0
        %v1501 = vadd.f32 %v1488, %v1500
        %v1502 = vpop.f32.mrf.mxu0
        %1503 = vdwg.mxu0
        %1504 = vmatpush.bf16.msra.mxu0 %v1123
        %1505 = vmatpush.bf16.msra.mxu0 %v1119
        %1506 = vmatpush.bf16.msra.mxu0 %v1115
        %1507 = vmatpush.bf16.msra.mxu0 %v1111
        %1508 = vmatpush.bf16.msra.mxu0 %v1107
        %1509 = vmatpush.bf16.msra.mxu0 %v1103
        %1510 = vmatpush.bf16.msra.mxu0 %v1099
        %1511 = vmatpush.bf16.msra.mxu0 %v1095
        %1512 = vmatmul.bf16.gmra.mxu0 %v566
        %v1513 = vpop.f32.mrf.mxu0
        %v1514 = vadd.f32 %v703, %v1513
        %v1515 = vpop.f32.mrf.mxu0
        %1516 = vdwg.mxu0
        %1517 = vmatpush.bf16.msra.mxu0 %v1155
        %1518 = vmatpush.bf16.msra.mxu0 %v1151
        %1519 = vmatpush.bf16.msra.mxu0 %v1147
        %1520 = vmatpush.bf16.msra.mxu0 %v1143
        %1521 = vmatpush.bf16.msra.mxu0 %v1139
        %1522 = vmatpush.bf16.msra.mxu0 %v1135
        %1523 = vmatpush.bf16.msra.mxu0 %v1131
        %1524 = vmatpush.bf16.msra.mxu0 %v1127
        %1525 = vmatmul.bf16.gmra.mxu0 %v567
        %v1526 = vpop.f32.mrf.mxu0
        %v1527 = vadd.f32 %v1514, %v1526
        %v1528 = vpop.f32.mrf.mxu0
        %1529 = vdwg.mxu0
        %1530 = vmatpush.bf16.msra.mxu0 %v1187
        %1531 = vmatpush.bf16.msra.mxu0 %v1183
        %1532 = vmatpush.bf16.msra.mxu0 %v1179
        %1533 = vmatpush.bf16.msra.mxu0 %v1175
        %1534 = vmatpush.bf16.msra.mxu0 %v1171
        %1535 = vmatpush.bf16.msra.mxu0 %v1167
        %1536 = vmatpush.bf16.msra.mxu0 %v1163
        %1537 = vmatpush.bf16.msra.mxu0 %v1159
        %1538 = vmatmul.bf16.gmra.mxu0 %v568
        %v1539 = vpop.f32.mrf.mxu0
        %v1540 = vadd.f32 %v1527, %v1539
        %v1541 = vpop.f32.mrf.mxu0
        %1542 = vdwg.mxu0
        %1543 = vmatpush.bf16.msra.mxu0 %v1219
        %1544 = vmatpush.bf16.msra.mxu0 %v1215
        %1545 = vmatpush.bf16.msra.mxu0 %v1211
        %1546 = vmatpush.bf16.msra.mxu0 %v1207
        %1547 = vmatpush.bf16.msra.mxu0 %v1203
        %1548 = vmatpush.bf16.msra.mxu0 %v1199
        %1549 = vmatpush.bf16.msra.mxu0 %v1195
        %1550 = vmatpush.bf16.msra.mxu0 %v1191
        %1551 = vmatmul.bf16.gmra.mxu0 %v569
        %v1552 = vpop.f32.mrf.mxu0
        %v1553 = vadd.f32 %v1540, %v1552
        %v1554 = vpop.f32.mrf.mxu0
        %1555 = vdwg.mxu0
        %v1556 = vmax.f32 %v1397, 0.0
        %v1557 = vmax.f32 %v1449, 0.0
        %v1558 = vmax.f32 %v1501, 0.0
        %v1559 = vmax.f32 %v1553, 0.0
        %v1560 = vpack.c.bf16 %v1556, %v1556
        %v1561 = vpack.c.bf16 %v1557, %v1557
        %v1562 = vpack.c.bf16 %v1558, %v1558
        %v1563 = vpack.c.bf16 %v1559, %v1559
        %v1564 = vld [vmem:[#allocation11] sm:$0xff]
        %v1565 = vld [vmem:[#allocation11 + $0x8] sm:$0xff]
        %v1566 = vld [vmem:[#allocation11 + $0x10] sm:$0xff]
        %v1567 = vld [vmem:[#allocation11 + $0x18] sm:$0xff]
        %v1568 = vld [vmem:[#allocation11 + $0x20] sm:$0xff]
        %v1569 = vld [vmem:[#allocation11 + $0x28] sm:$0xff]
        %v1570 = vld [vmem:[#allocation11 + $0x30] sm:$0xff]
        %v1571 = vld [vmem:[#allocation11 + $0x38] sm:$0xff]
        %v1572 = vld [vmem:[#allocation11 + $0x40] sm:$0xff]
        %v1573 = vld [vmem:[#allocation11 + $0x48] sm:$0xff]
        %v1574 = vld [vmem:[#allocation11 + $0x50] sm:$0xff]
        %v1575 = vld [vmem:[#allocation11 + $0x58] sm:$0xff]
        %v1576 = vld [vmem:[#allocation11 + $0x60] sm:$0xff]
        %v1577 = vld [vmem:[#allocation11 + $0x68] sm:$0xff]
        %v1578 = vld [vmem:[#allocation11 + $0x70] sm:$0xff]
        %v1579 = vld [vmem:[#allocation11 + $0x78] sm:$0xff]
        %v1580 = vld [vmem:[#allocation11 + $0x80] sm:$0xff]
        %v1581 = vld [vmem:[#allocation11 + $0x88] sm:$0xff]
        %v1582 = vld [vmem:[#allocation11 + $0x90] sm:$0xff]
        %v1583 = vld [vmem:[#allocation11 + $0x98] sm:$0xff]
        %v1584 = vld [vmem:[#allocation11 + $0xa0] sm:$0xff]
        %v1585 = vld [vmem:[#allocation11 + $0xa8] sm:$0xff]
        %v1586 = vld [vmem:[#allocation11 + $0xb0] sm:$0xff]
        %v1587 = vld [vmem:[#allocation11 + $0xb8] sm:$0xff]
        %v1588 = vld [vmem:[#allocation11 + $0xc0] sm:$0xff]
        %v1589 = vld [vmem:[#allocation11 + $0xc8] sm:$0xff]
        %v1590 = vld [vmem:[#allocation11 + $0xd0] sm:$0xff]
        %v1591 = vld [vmem:[#allocation11 + $0xd8] sm:$0xff]
        %v1592 = vld [vmem:[#allocation11 + $0xe0] sm:$0xff]
        %v1593 = vld [vmem:[#allocation11 + $0xe8] sm:$0xff]
        %v1594 = vld [vmem:[#allocation11 + $0xf0] sm:$0xff]
        %v1595 = vld [vmem:[#allocation11 + $0xf8] sm:$0xff]
        %v1596 = vld [vmem:[#allocation11 + $0x100] sm:$0xff]
        %v1597 = vld [vmem:[#allocation11 + $0x108] sm:$0xff]
        %v1598 = vld [vmem:[#allocation11 + $0x110] sm:$0xff]
        %v1599 = vld [vmem:[#allocation11 + $0x118] sm:$0xff]
        %v1600 = vld [vmem:[#allocation11 + $0x120] sm:$0xff]
        %v1601 = vld [vmem:[#allocation11 + $0x128] sm:$0xff]
        %v1602 = vld [vmem:[#allocation11 + $0x130] sm:$0xff]
        %v1603 = vld [vmem:[#allocation11 + $0x138] sm:$0xff]
        %v1604 = vld [vmem:[#allocation11 + $0x140] sm:$0xff]
        %v1605 = vld [vmem:[#allocation11 + $0x148] sm:$0xff]
        %v1606 = vld [vmem:[#allocation11 + $0x150] sm:$0xff]
        %v1607 = vld [vmem:[#allocation11 + $0x158] sm:$0xff]
        %v1608 = vld [vmem:[#allocation11 + $0x160] sm:$0xff]
        %v1609 = vld [vmem:[#allocation11 + $0x168] sm:$0xff]
        %v1610 = vld [vmem:[#allocation11 + $0x170] sm:$0xff]
        %v1611 = vld [vmem:[#allocation11 + $0x178] sm:$0xff]
        %v1612 = vld [vmem:[#allocation11 + $0x180] sm:$0xff]
        %v1613 = vld [vmem:[#allocation11 + $0x188] sm:$0xff]
        %v1614 = vld [vmem:[#allocation11 + $0x190] sm:$0xff]
        %v1615 = vld [vmem:[#allocation11 + $0x198] sm:$0xff]
        %v1616 = vld [vmem:[#allocation11 + $0x1a0] sm:$0xff]
        %v1617 = vld [vmem:[#allocation11 + $0x1a8] sm:$0xff]
        %v1618 = vld [vmem:[#allocation11 + $0x1b0] sm:$0xff]
        %v1619 = vld [vmem:[#allocation11 + $0x1b8] sm:$0xff]
        %v1620 = vld [vmem:[#allocation11 + $0x1c0] sm:$0xff]
        %v1621 = vld [vmem:[#allocation11 + $0x1c8] sm:$0xff]
        %v1622 = vld [vmem:[#allocation11 + $0x1d0] sm:$0xff]
        %v1623 = vld [vmem:[#allocation11 + $0x1d8] sm:$0xff]
        %v1624 = vld [vmem:[#allocation11 + $0x1e0] sm:$0xff]
        %v1625 = vld [vmem:[#allocation11 + $0x1e8] sm:$0xff]
        %v1626 = vld [vmem:[#allocation11 + $0x1f0] sm:$0xff]
        %v1627 = vld [vmem:[#allocation11 + $0x1f8] sm:$0xff]
        %v1628 = vld [vmem:[#allocation11 + $0x200] sm:$0xff]
        %v1629 = vld [vmem:[#allocation11 + $0x208] sm:$0xff]
        %v1630 = vld [vmem:[#allocation11 + $0x210] sm:$0xff]
        %v1631 = vld [vmem:[#allocation11 + $0x218] sm:$0xff]
        %v1632 = vld [vmem:[#allocation11 + $0x220] sm:$0xff]
        %v1633 = vld [vmem:[#allocation11 + $0x228] sm:$0xff]
        %v1634 = vld [vmem:[#allocation11 + $0x230] sm:$0xff]
        %v1635 = vld [vmem:[#allocation11 + $0x238] sm:$0xff]
        %v1636 = vld [vmem:[#allocation11 + $0x240] sm:$0xff]
        %v1637 = vld [vmem:[#allocation11 + $0x248] sm:$0xff]
        %v1638 = vld [vmem:[#allocation11 + $0x250] sm:$0xff]
        %v1639 = vld [vmem:[#allocation11 + $0x258] sm:$0xff]
        %v1640 = vld [vmem:[#allocation11 + $0x260] sm:$0xff]
        %v1641 = vld [vmem:[#allocation11 + $0x268] sm:$0xff]
        %v1642 = vld [vmem:[#allocation11 + $0x270] sm:$0xff]
        %v1643 = vld [vmem:[#allocation11 + $0x278] sm:$0xff]
        %v1644 = vld [vmem:[#allocation11 + $0x280] sm:$0xff]
        %v1645 = vld [vmem:[#allocation11 + $0x288] sm:$0xff]
        %v1646 = vld [vmem:[#allocation11 + $0x290] sm:$0xff]
        %v1647 = vld [vmem:[#allocation11 + $0x298] sm:$0xff]
        %v1648 = vld [vmem:[#allocation11 + $0x2a0] sm:$0xff]
        %v1649 = vld [vmem:[#allocation11 + $0x2a8] sm:$0xff]
        %v1650 = vld [vmem:[#allocation11 + $0x2b0] sm:$0xff]
        %v1651 = vld [vmem:[#allocation11 + $0x2b8] sm:$0xff]
        %v1652 = vld [vmem:[#allocation11 + $0x2c0] sm:$0xff]
        %v1653 = vld [vmem:[#allocation11 + $0x2c8] sm:$0xff]
        %v1654 = vld [vmem:[#allocation11 + $0x2d0] sm:$0xff]
        %v1655 = vld [vmem:[#allocation11 + $0x2d8] sm:$0xff]
        %v1656 = vld [vmem:[#allocation11 + $0x2e0] sm:$0xff]
        %v1657 = vld [vmem:[#allocation11 + $0x2e8] sm:$0xff]
        %v1658 = vld [vmem:[#allocation11 + $0x2f0] sm:$0xff]
        %v1659 = vld [vmem:[#allocation11 + $0x2f8] sm:$0xff]
        %v1660 = vld [vmem:[#allocation11 + $0x300] sm:$0xff]
        %v1661 = vld [vmem:[#allocation11 + $0x308] sm:$0xff]
        %v1662 = vld [vmem:[#allocation11 + $0x310] sm:$0xff]
        %v1663 = vld [vmem:[#allocation11 + $0x318] sm:$0xff]
        %v1664 = vld [vmem:[#allocation11 + $0x320] sm:$0xff]
        %v1665 = vld [vmem:[#allocation11 + $0x328] sm:$0xff]
        %v1666 = vld [vmem:[#allocation11 + $0x330] sm:$0xff]
        %v1667 = vld [vmem:[#allocation11 + $0x338] sm:$0xff]
        %v1668 = vld [vmem:[#allocation11 + $0x340] sm:$0xff]
        %v1669 = vld [vmem:[#allocation11 + $0x348] sm:$0xff]
        %v1670 = vld [vmem:[#allocation11 + $0x350] sm:$0xff]
        %v1671 = vld [vmem:[#allocation11 + $0x358] sm:$0xff]
        %v1672 = vld [vmem:[#allocation11 + $0x360] sm:$0xff]
        %v1673 = vld [vmem:[#allocation11 + $0x368] sm:$0xff]
        %v1674 = vld [vmem:[#allocation11 + $0x370] sm:$0xff]
        %v1675 = vld [vmem:[#allocation11 + $0x378] sm:$0xff]
        %v1676 = vld [vmem:[#allocation11 + $0x380] sm:$0xff]
        %v1677 = vld [vmem:[#allocation11 + $0x388] sm:$0xff]
        %v1678 = vld [vmem:[#allocation11 + $0x390] sm:$0xff]
        %v1679 = vld [vmem:[#allocation11 + $0x398] sm:$0xff]
        %v1680 = vld [vmem:[#allocation11 + $0x3a0] sm:$0xff]
        %v1681 = vld [vmem:[#allocation11 + $0x3a8] sm:$0xff]
        %v1682 = vld [vmem:[#allocation11 + $0x3b0] sm:$0xff]
        %v1683 = vld [vmem:[#allocation11 + $0x3b8] sm:$0xff]
        %v1684 = vld [vmem:[#allocation11 + $0x3c0] sm:$0xff]
        %v1685 = vld [vmem:[#allocation11 + $0x3c8] sm:$0xff]
        %v1686 = vld [vmem:[#allocation11 + $0x3d0] sm:$0xff]
        %v1687 = vld [vmem:[#allocation11 + $0x3d8] sm:$0xff]
        %v1688 = vld [vmem:[#allocation11 + $0x3e0] sm:$0xff]
        %v1689 = vld [vmem:[#allocation11 + $0x3e8] sm:$0xff]
        %v1690 = vld [vmem:[#allocation11 + $0x3f0] sm:$0xff]
        %v1691 = vld [vmem:[#allocation11 + $0x3f8] sm:$0xff]
        %v1692 = vld [vmem:[%s6] sm:$0xf]
        %v1694 = vperm.slane %v1692, 0
        %v1695 = vperm.slane %v1692, 1
        %v1696 = vperm.slane %v1692, 2
        %v1697 = vperm.slane %v1692, 3
        %v1830 = vunpack.c.l.b16 %v1564
        %v1831 = vunpack.c.h.b16 %v1564
        %v1832 = vunpack.c.l.b16 %v1565
        %v1833 = vunpack.c.h.b16 %v1565
        %v1834 = vunpack.c.l.b16 %v1566
        %v1835 = vunpack.c.h.b16 %v1566
        %v1836 = vunpack.c.l.b16 %v1567
        %v1837 = vunpack.c.h.b16 %v1567
        %v1838 = vunpack.c.l.b16 %v1568
        %v1839 = vunpack.c.h.b16 %v1568
        %v1840 = vunpack.c.l.b16 %v1569
        %v1841 = vunpack.c.h.b16 %v1569
        %v1842 = vunpack.c.l.b16 %v1570
        %v1843 = vunpack.c.h.b16 %v1570
        %v1844 = vunpack.c.l.b16 %v1571
        %v1845 = vunpack.c.h.b16 %v1571
        %v1846 = vunpack.c.l.b16 %v1572
        %v1847 = vunpack.c.h.b16 %v1572
        %v1848 = vunpack.c.l.b16 %v1573
        %v1849 = vunpack.c.h.b16 %v1573
        %v1850 = vunpack.c.l.b16 %v1574
        %v1851 = vunpack.c.h.b16 %v1574
        %v1852 = vunpack.c.l.b16 %v1575
        %v1853 = vunpack.c.h.b16 %v1575
        %v1854 = vunpack.c.l.b16 %v1576
        %v1855 = vunpack.c.h.b16 %v1576
        %v1856 = vunpack.c.l.b16 %v1577
        %v1857 = vunpack.c.h.b16 %v1577
        %v1858 = vunpack.c.l.b16 %v1578
        %v1859 = vunpack.c.h.b16 %v1578
        %v1860 = vunpack.c.l.b16 %v1579
        %v1861 = vunpack.c.h.b16 %v1579
        %v1862 = vunpack.c.l.b16 %v1580
        %v1863 = vunpack.c.h.b16 %v1580
        %v1864 = vunpack.c.l.b16 %v1581
        %v1865 = vunpack.c.h.b16 %v1581
        %v1866 = vunpack.c.l.b16 %v1582
        %v1867 = vunpack.c.h.b16 %v1582
        %v1868 = vunpack.c.l.b16 %v1583
        %v1869 = vunpack.c.h.b16 %v1583
        %v1870 = vunpack.c.l.b16 %v1584
        %v1871 = vunpack.c.h.b16 %v1584
        %v1872 = vunpack.c.l.b16 %v1585
        %v1873 = vunpack.c.h.b16 %v1585
        %v1874 = vunpack.c.l.b16 %v1586
        %v1875 = vunpack.c.h.b16 %v1586
        %v1876 = vunpack.c.l.b16 %v1587
        %v1877 = vunpack.c.h.b16 %v1587
        %v1878 = vunpack.c.l.b16 %v1588
        %v1879 = vunpack.c.h.b16 %v1588
        %v1880 = vunpack.c.l.b16 %v1589
        %v1881 = vunpack.c.h.b16 %v1589
        %v1882 = vunpack.c.l.b16 %v1590
        %v1883 = vunpack.c.h.b16 %v1590
        %v1884 = vunpack.c.l.b16 %v1591
        %v1885 = vunpack.c.h.b16 %v1591
        %v1886 = vunpack.c.l.b16 %v1592
        %v1887 = vunpack.c.h.b16 %v1592
        %v1888 = vunpack.c.l.b16 %v1593
        %v1889 = vunpack.c.h.b16 %v1593
        %v1890 = vunpack.c.l.b16 %v1594
        %v1891 = vunpack.c.h.b16 %v1594
        %v1892 = vunpack.c.l.b16 %v1595
        %v1893 = vunpack.c.h.b16 %v1595
        %v1894 = vunpack.c.l.b16 %v1596
        %v1895 = vunpack.c.h.b16 %v1596
        %v1896 = vunpack.c.l.b16 %v1597
        %v1897 = vunpack.c.h.b16 %v1597
        %v1898 = vunpack.c.l.b16 %v1598
        %v1899 = vunpack.c.h.b16 %v1598
        %v1900 = vunpack.c.l.b16 %v1599
        %v1901 = vunpack.c.h.b16 %v1599
        %v1902 = vunpack.c.l.b16 %v1600
        %v1903 = vunpack.c.h.b16 %v1600
        %v1904 = vunpack.c.l.b16 %v1601
        %v1905 = vunpack.c.h.b16 %v1601
        %v1906 = vunpack.c.l.b16 %v1602
        %v1907 = vunpack.c.h.b16 %v1602
        %v1908 = vunpack.c.l.b16 %v1603
        %v1909 = vunpack.c.h.b16 %v1603
        %v1910 = vunpack.c.l.b16 %v1604
        %v1911 = vunpack.c.h.b16 %v1604
        %v1912 = vunpack.c.l.b16 %v1605
        %v1913 = vunpack.c.h.b16 %v1605
        %v1914 = vunpack.c.l.b16 %v1606
        %v1915 = vunpack.c.h.b16 %v1606
        %v1916 = vunpack.c.l.b16 %v1607
        %v1917 = vunpack.c.h.b16 %v1607
        %v1918 = vunpack.c.l.b16 %v1608
        %v1919 = vunpack.c.h.b16 %v1608
        %v1920 = vunpack.c.l.b16 %v1609
        %v1921 = vunpack.c.h.b16 %v1609
        %v1922 = vunpack.c.l.b16 %v1610
        %v1923 = vunpack.c.h.b16 %v1610
        %v1924 = vunpack.c.l.b16 %v1611
        %v1925 = vunpack.c.h.b16 %v1611
        %v1926 = vunpack.c.l.b16 %v1612
        %v1927 = vunpack.c.h.b16 %v1612
        %v1928 = vunpack.c.l.b16 %v1613
        %v1929 = vunpack.c.h.b16 %v1613
        %v1930 = vunpack.c.l.b16 %v1614
        %v1931 = vunpack.c.h.b16 %v1614
        %v1932 = vunpack.c.l.b16 %v1615
        %v1933 = vunpack.c.h.b16 %v1615
        %v1934 = vunpack.c.l.b16 %v1616
        %v1935 = vunpack.c.h.b16 %v1616
        %v1936 = vunpack.c.l.b16 %v1617
        %v1937 = vunpack.c.h.b16 %v1617
        %v1938 = vunpack.c.l.b16 %v1618
        %v1939 = vunpack.c.h.b16 %v1618
        %v1940 = vunpack.c.l.b16 %v1619
        %v1941 = vunpack.c.h.b16 %v1619
        %v1942 = vunpack.c.l.b16 %v1620
        %v1943 = vunpack.c.h.b16 %v1620
        %v1944 = vunpack.c.l.b16 %v1621
        %v1945 = vunpack.c.h.b16 %v1621
        %v1946 = vunpack.c.l.b16 %v1622
        %v1947 = vunpack.c.h.b16 %v1622
        %v1948 = vunpack.c.l.b16 %v1623
        %v1949 = vunpack.c.h.b16 %v1623
        %v1950 = vunpack.c.l.b16 %v1624
        %v1951 = vunpack.c.h.b16 %v1624
        %v1952 = vunpack.c.l.b16 %v1625
        %v1953 = vunpack.c.h.b16 %v1625
        %v1954 = vunpack.c.l.b16 %v1626
        %v1955 = vunpack.c.h.b16 %v1626
        %v1956 = vunpack.c.l.b16 %v1627
        %v1957 = vunpack.c.h.b16 %v1627
        %v1958 = vunpack.c.l.b16 %v1628
        %v1959 = vunpack.c.h.b16 %v1628
        %v1960 = vunpack.c.l.b16 %v1629
        %v1961 = vunpack.c.h.b16 %v1629
        %v1962 = vunpack.c.l.b16 %v1630
        %v1963 = vunpack.c.h.b16 %v1630
        %v1964 = vunpack.c.l.b16 %v1631
        %v1965 = vunpack.c.h.b16 %v1631
        %v1966 = vunpack.c.l.b16 %v1632
        %v1967 = vunpack.c.h.b16 %v1632
        %v1968 = vunpack.c.l.b16 %v1633
        %v1969 = vunpack.c.h.b16 %v1633
        %v1970 = vunpack.c.l.b16 %v1634
        %v1971 = vunpack.c.h.b16 %v1634
        %v1972 = vunpack.c.l.b16 %v1635
        %v1973 = vunpack.c.h.b16 %v1635
        %v1974 = vunpack.c.l.b16 %v1636
        %v1975 = vunpack.c.h.b16 %v1636
        %v1976 = vunpack.c.l.b16 %v1637
        %v1977 = vunpack.c.h.b16 %v1637
        %v1978 = vunpack.c.l.b16 %v1638
        %v1979 = vunpack.c.h.b16 %v1638
        %v1980 = vunpack.c.l.b16 %v1639
        %v1981 = vunpack.c.h.b16 %v1639
        %v1982 = vunpack.c.l.b16 %v1640
        %v1983 = vunpack.c.h.b16 %v1640
        %v1984 = vunpack.c.l.b16 %v1641
        %v1985 = vunpack.c.h.b16 %v1641
        %v1986 = vunpack.c.l.b16 %v1642
        %v1987 = vunpack.c.h.b16 %v1642
        %v1988 = vunpack.c.l.b16 %v1643
        %v1989 = vunpack.c.h.b16 %v1643
        %v1990 = vunpack.c.l.b16 %v1644
        %v1991 = vunpack.c.h.b16 %v1644
        %v1992 = vunpack.c.l.b16 %v1645
        %v1993 = vunpack.c.h.b16 %v1645
        %v1994 = vunpack.c.l.b16 %v1646
        %v1995 = vunpack.c.h.b16 %v1646
        %v1996 = vunpack.c.l.b16 %v1647
        %v1997 = vunpack.c.h.b16 %v1647
        %v1998 = vunpack.c.l.b16 %v1648
        %v1999 = vunpack.c.h.b16 %v1648
        %v2000 = vunpack.c.l.b16 %v1649
        %v2001 = vunpack.c.h.b16 %v1649
        %v2002 = vunpack.c.l.b16 %v1650
        %v2003 = vunpack.c.h.b16 %v1650
        %v2004 = vunpack.c.l.b16 %v1651
        %v2005 = vunpack.c.h.b16 %v1651
        %v2006 = vunpack.c.l.b16 %v1652
        %v2007 = vunpack.c.h.b16 %v1652
        %v2008 = vunpack.c.l.b16 %v1653
        %v2009 = vunpack.c.h.b16 %v1653
        %v2010 = vunpack.c.l.b16 %v1654
        %v2011 = vunpack.c.h.b16 %v1654
        %v2012 = vunpack.c.l.b16 %v1655
        %v2013 = vunpack.c.h.b16 %v1655
        %v2014 = vunpack.c.l.b16 %v1656
        %v2015 = vunpack.c.h.b16 %v1656
        %v2016 = vunpack.c.l.b16 %v1657
        %v2017 = vunpack.c.h.b16 %v1657
        %v2018 = vunpack.c.l.b16 %v1658
        %v2019 = vunpack.c.h.b16 %v1658
        %v2020 = vunpack.c.l.b16 %v1659
        %v2021 = vunpack.c.h.b16 %v1659
        %v2022 = vunpack.c.l.b16 %v1660
        %v2023 = vunpack.c.h.b16 %v1660
        %v2024 = vunpack.c.l.b16 %v1661
        %v2025 = vunpack.c.h.b16 %v1661
        %v2026 = vunpack.c.l.b16 %v1662
        %v2027 = vunpack.c.h.b16 %v1662
        %v2028 = vunpack.c.l.b16 %v1663
        %v2029 = vunpack.c.h.b16 %v1663
        %v2030 = vunpack.c.l.b16 %v1664
        %v2031 = vunpack.c.h.b16 %v1664
        %v2032 = vunpack.c.l.b16 %v1665
        %v2033 = vunpack.c.h.b16 %v1665
        %v2034 = vunpack.c.l.b16 %v1666
        %v2035 = vunpack.c.h.b16 %v1666
        %v2036 = vunpack.c.l.b16 %v1667
        %v2037 = vunpack.c.h.b16 %v1667
        %v2038 = vunpack.c.l.b16 %v1668
        %v2039 = vunpack.c.h.b16 %v1668
        %v2040 = vunpack.c.l.b16 %v1669
        %v2041 = vunpack.c.h.b16 %v1669
        %v2042 = vunpack.c.l.b16 %v1670
        %v2043 = vunpack.c.h.b16 %v1670
        %v2044 = vunpack.c.l.b16 %v1671
        %v2045 = vunpack.c.h.b16 %v1671
        %v2046 = vunpack.c.l.b16 %v1672
        %v2047 = vunpack.c.h.b16 %v1672
        %v2048 = vunpack.c.l.b16 %v1673
        %v2049 = vunpack.c.h.b16 %v1673
        %v2050 = vunpack.c.l.b16 %v1674
        %v2051 = vunpack.c.h.b16 %v1674
        %v2052 = vunpack.c.l.b16 %v1675
        %v2053 = vunpack.c.h.b16 %v1675
        %v2054 = vunpack.c.l.b16 %v1676
        %v2055 = vunpack.c.h.b16 %v1676
        %v2056 = vunpack.c.l.b16 %v1677
        %v2057 = vunpack.c.h.b16 %v1677
        %v2058 = vunpack.c.l.b16 %v1678
        %v2059 = vunpack.c.h.b16 %v1678
        %v2060 = vunpack.c.l.b16 %v1679
        %v2061 = vunpack.c.h.b16 %v1679
        %v2062 = vunpack.c.l.b16 %v1680
        %v2063 = vunpack.c.h.b16 %v1680
        %v2064 = vunpack.c.l.b16 %v1681
        %v2065 = vunpack.c.h.b16 %v1681
        %v2066 = vunpack.c.l.b16 %v1682
        %v2067 = vunpack.c.h.b16 %v1682
        %v2068 = vunpack.c.l.b16 %v1683
        %v2069 = vunpack.c.h.b16 %v1683
        %v2070 = vunpack.c.l.b16 %v1684
        %v2071 = vunpack.c.h.b16 %v1684
        %v2072 = vunpack.c.l.b16 %v1685
        %v2073 = vunpack.c.h.b16 %v1685
        %v2074 = vunpack.c.l.b16 %v1686
        %v2075 = vunpack.c.h.b16 %v1686
        %v2076 = vunpack.c.l.b16 %v1687
        %v2077 = vunpack.c.h.b16 %v1687
        %v2078 = vunpack.c.l.b16 %v1688
        %v2079 = vunpack.c.h.b16 %v1688
        %v2080 = vunpack.c.l.b16 %v1689
        %v2081 = vunpack.c.h.b16 %v1689
        %v2082 = vunpack.c.l.b16 %v1690
        %v2083 = vunpack.c.h.b16 %v1690
        %v2084 = vunpack.c.l.b16 %v1691
        %v2085 = vunpack.c.h.b16 %v1691
        %v2086 = vpack.c.b16 %v1834, %v1830
        %v2087 = vpack.c.b16 %v1835, %v1831
        %v2088 = vpack.c.b16 %v1836, %v1832
        %v2089 = vpack.c.b16 %v1837, %v1833
        %v2090 = vpack.c.b16 %v1842, %v1838
        %v2091 = vpack.c.b16 %v1843, %v1839
        %v2092 = vpack.c.b16 %v1844, %v1840
        %v2093 = vpack.c.b16 %v1845, %v1841
        %v2094 = vpack.c.b16 %v1850, %v1846
        %v2095 = vpack.c.b16 %v1851, %v1847
        %v2096 = vpack.c.b16 %v1852, %v1848
        %v2097 = vpack.c.b16 %v1853, %v1849
        %v2098 = vpack.c.b16 %v1858, %v1854
        %v2099 = vpack.c.b16 %v1859, %v1855
        %v2100 = vpack.c.b16 %v1860, %v1856
        %v2101 = vpack.c.b16 %v1861, %v1857
        %v2102 = vpack.c.b16 %v1866, %v1862
        %v2103 = vpack.c.b16 %v1867, %v1863
        %v2104 = vpack.c.b16 %v1868, %v1864
        %v2105 = vpack.c.b16 %v1869, %v1865
        %v2106 = vpack.c.b16 %v1874, %v1870
        %v2107 = vpack.c.b16 %v1875, %v1871
        %v2108 = vpack.c.b16 %v1876, %v1872
        %v2109 = vpack.c.b16 %v1877, %v1873
        %v2110 = vpack.c.b16 %v1882, %v1878
        %v2111 = vpack.c.b16 %v1883, %v1879
        %v2112 = vpack.c.b16 %v1884, %v1880
        %v2113 = vpack.c.b16 %v1885, %v1881
        %v2114 = vpack.c.b16 %v1890, %v1886
        %v2115 = vpack.c.b16 %v1891, %v1887
        %v2116 = vpack.c.b16 %v1892, %v1888
        %v2117 = vpack.c.b16 %v1893, %v1889
        %v2118 = vpack.c.b16 %v1898, %v1894
        %v2119 = vpack.c.b16 %v1899, %v1895
        %v2120 = vpack.c.b16 %v1900, %v1896
        %v2121 = vpack.c.b16 %v1901, %v1897
        %v2122 = vpack.c.b16 %v1906, %v1902
        %v2123 = vpack.c.b16 %v1907, %v1903
        %v2124 = vpack.c.b16 %v1908, %v1904
        %v2125 = vpack.c.b16 %v1909, %v1905
        %v2126 = vpack.c.b16 %v1914, %v1910
        %v2127 = vpack.c.b16 %v1915, %v1911
        %v2128 = vpack.c.b16 %v1916, %v1912
        %v2129 = vpack.c.b16 %v1917, %v1913
        %v2130 = vpack.c.b16 %v1922, %v1918
        %v2131 = vpack.c.b16 %v1923, %v1919
        %v2132 = vpack.c.b16 %v1924, %v1920
        %v2133 = vpack.c.b16 %v1925, %v1921
        %v2134 = vpack.c.b16 %v1930, %v1926
        %v2135 = vpack.c.b16 %v1931, %v1927
        %v2136 = vpack.c.b16 %v1932, %v1928
        %v2137 = vpack.c.b16 %v1933, %v1929
        %v2138 = vpack.c.b16 %v1938, %v1934
        %v2139 = vpack.c.b16 %v1939, %v1935
        %v2140 = vpack.c.b16 %v1940, %v1936
        %v2141 = vpack.c.b16 %v1941, %v1937
        %v2142 = vpack.c.b16 %v1946, %v1942
        %v2143 = vpack.c.b16 %v1947, %v1943
        %v2144 = vpack.c.b16 %v1948, %v1944
        %v2145 = vpack.c.b16 %v1949, %v1945
        %v2146 = vpack.c.b16 %v1954, %v1950
        %v2147 = vpack.c.b16 %v1955, %v1951
        %v2148 = vpack.c.b16 %v1956, %v1952
        %v2149 = vpack.c.b16 %v1957, %v1953
        %v2150 = vpack.c.b16 %v1962, %v1958
        %v2151 = vpack.c.b16 %v1963, %v1959
        %v2152 = vpack.c.b16 %v1964, %v1960
        %v2153 = vpack.c.b16 %v1965, %v1961
        %v2154 = vpack.c.b16 %v1970, %v1966
        %v2155 = vpack.c.b16 %v1971, %v1967
        %v2156 = vpack.c.b16 %v1972, %v1968
        %v2157 = vpack.c.b16 %v1973, %v1969
        %v2158 = vpack.c.b16 %v1978, %v1974
        %v2159 = vpack.c.b16 %v1979, %v1975
        %v2160 = vpack.c.b16 %v1980, %v1976
        %v2161 = vpack.c.b16 %v1981, %v1977
        %v2162 = vpack.c.b16 %v1986, %v1982
        %v2163 = vpack.c.b16 %v1987, %v1983
        %v2164 = vpack.c.b16 %v1988, %v1984
        %v2165 = vpack.c.b16 %v1989, %v1985
        %v2166 = vpack.c.b16 %v1994, %v1990
        %v2167 = vpack.c.b16 %v1995, %v1991
        %v2168 = vpack.c.b16 %v1996, %v1992
        %v2169 = vpack.c.b16 %v1997, %v1993
        %v2170 = vpack.c.b16 %v2002, %v1998
        %v2171 = vpack.c.b16 %v2003, %v1999
        %v2172 = vpack.c.b16 %v2004, %v2000
        %v2173 = vpack.c.b16 %v2005, %v2001
        %v2174 = vpack.c.b16 %v2010, %v2006
        %v2175 = vpack.c.b16 %v2011, %v2007
        %v2176 = vpack.c.b16 %v2012, %v2008
        %v2177 = vpack.c.b16 %v2013, %v2009
        %v2178 = vpack.c.b16 %v2018, %v2014
        %v2179 = vpack.c.b16 %v2019, %v2015
        %v2180 = vpack.c.b16 %v2020, %v2016
        %v2181 = vpack.c.b16 %v2021, %v2017
        %v2182 = vpack.c.b16 %v2026, %v2022
        %v2183 = vpack.c.b16 %v2027, %v2023
        %v2184 = vpack.c.b16 %v2028, %v2024
        %v2185 = vpack.c.b16 %v2029, %v2025
        %v2186 = vpack.c.b16 %v2034, %v2030
        %v2187 = vpack.c.b16 %v2035, %v2031
        %v2188 = vpack.c.b16 %v2036, %v2032
        %v2189 = vpack.c.b16 %v2037, %v2033
        %v2190 = vpack.c.b16 %v2042, %v2038
        %v2191 = vpack.c.b16 %v2043, %v2039
        %v2192 = vpack.c.b16 %v2044, %v2040
        %v2193 = vpack.c.b16 %v2045, %v2041
        %v2194 = vpack.c.b16 %v2050, %v2046
        %v2195 = vpack.c.b16 %v2051, %v2047
        %v2196 = vpack.c.b16 %v2052, %v2048
        %v2197 = vpack.c.b16 %v2053, %v2049
        %v2198 = vpack.c.b16 %v2058, %v2054
        %v2199 = vpack.c.b16 %v2059, %v2055
        %v2200 = vpack.c.b16 %v2060, %v2056
        %v2201 = vpack.c.b16 %v2061, %v2057
        %v2202 = vpack.c.b16 %v2066, %v2062
        %v2203 = vpack.c.b16 %v2067, %v2063
        %v2204 = vpack.c.b16 %v2068, %v2064
        %v2205 = vpack.c.b16 %v2069, %v2065
        %v2206 = vpack.c.b16 %v2074, %v2070
        %v2207 = vpack.c.b16 %v2075, %v2071
        %v2208 = vpack.c.b16 %v2076, %v2072
        %v2209 = vpack.c.b16 %v2077, %v2073
        %v2210 = vpack.c.b16 %v2082, %v2078
        %v2211 = vpack.c.b16 %v2083, %v2079
        %v2212 = vpack.c.b16 %v2084, %v2080
        %v2213 = vpack.c.b16 %v2085, %v2081
        %2342 = vmatpush.bf16.msra.mxu0 %v2114
        %2343 = vmatpush.bf16.msra.mxu0 %v2110
        %2344 = vmatpush.bf16.msra.mxu0 %v2106
        %2345 = vmatpush.bf16.msra.mxu0 %v2102
        %2346 = vmatpush.bf16.msra.mxu0 %v2098
        %2347 = vmatpush.bf16.msra.mxu0 %v2094
        %2348 = vmatpush.bf16.msra.mxu0 %v2090
        %2349 = vmatpush.bf16.msra.mxu0 %v2086
        %2350 = vmatmul.bf16.gmra.mxu0 %v1560
        %v2351 = vpop.f32.mrf.mxu0
        %v2352 = vadd.f32 %v1694, %v2351
        %v2353 = vpop.f32.mrf.mxu0
        %2354 = vdwg.mxu0
        %2355 = vmatpush.bf16.msra.mxu0 %v2146
        %2356 = vmatpush.bf16.msra.mxu0 %v2142
        %2357 = vmatpush.bf16.msra.mxu0 %v2138
        %2358 = vmatpush.bf16.msra.mxu0 %v2134
        %2359 = vmatpush.bf16.msra.mxu0 %v2130
        %2360 = vmatpush.bf16.msra.mxu0 %v2126
        %2361 = vmatpush.bf16.msra.mxu0 %v2122
        %2362 = vmatpush.bf16.msra.mxu0 %v2118
        %2363 = vmatmul.bf16.gmra.mxu0 %v1561
        %v2364 = vpop.f32.mrf.mxu0
        %v2365 = vadd.f32 %v2352, %v2364
        %v2366 = vpop.f32.mrf.mxu0
        %2367 = vdwg.mxu0
        %2368 = vmatpush.bf16.msra.mxu0 %v2178
        %2369 = vmatpush.bf16.msra.mxu0 %v2174
        %2370 = vmatpush.bf16.msra.mxu0 %v2170
        %2371 = vmatpush.bf16.msra.mxu0 %v2166
        %2372 = vmatpush.bf16.msra.mxu0 %v2162
        %2373 = vmatpush.bf16.msra.mxu0 %v2158
        %2374 = vmatpush.bf16.msra.mxu0 %v2154
        %2375 = vmatpush.bf16.msra.mxu0 %v2150
        %2376 = vmatmul.bf16.gmra.mxu0 %v1562
        %v2377 = vpop.f32.mrf.mxu0
        %v2378 = vadd.f32 %v2365, %v2377
        %v2379 = vpop.f32.mrf.mxu0
        %2380 = vdwg.mxu0
        %2381 = vmatpush.bf16.msra.mxu0 %v2210
        %2382 = vmatpush.bf16.msra.mxu0 %v2206
        %2383 = vmatpush.bf16.msra.mxu0 %v2202
        %2384 = vmatpush.bf16.msra.mxu0 %v2198
        %2385 = vmatpush.bf16.msra.mxu0 %v2194
        %2386 = vmatpush.bf16.msra.mxu0 %v2190
        %2387 = vmatpush.bf16.msra.mxu0 %v2186
        %2388 = vmatpush.bf16.msra.mxu0 %v2182
        %2389 = vmatmul.bf16.gmra.mxu0 %v1563
        %v2390 = vpop.f32.mrf.mxu0
        %v2391 = vadd.f32 %v2378, %v2390
        %v2392 = vpop.f32.mrf.mxu0
        %2393 = vdwg.mxu0
        %2394 = vmatpush.bf16.msra.mxu0 %v2115
        %2395 = vmatpush.bf16.msra.mxu0 %v2111
        %2396 = vmatpush.bf16.msra.mxu0 %v2107
        %2397 = vmatpush.bf16.msra.mxu0 %v2103
        %2398 = vmatpush.bf16.msra.mxu0 %v2099
        %2399 = vmatpush.bf16.msra.mxu0 %v2095
        %2400 = vmatpush.bf16.msra.mxu0 %v2091
        %2401 = vmatpush.bf16.msra.mxu0 %v2087
        %2402 = vmatmul.bf16.gmra.mxu0 %v1560
        %v2403 = vpop.f32.mrf.mxu0
        %v2404 = vadd.f32 %v1695, %v2403
        %v2405 = vpop.f32.mrf.mxu0
        %2406 = vdwg.mxu0
        %2407 = vmatpush.bf16.msra.mxu0 %v2147
        %2408 = vmatpush.bf16.msra.mxu0 %v2143
        %2409 = vmatpush.bf16.msra.mxu0 %v2139
        %2410 = vmatpush.bf16.msra.mxu0 %v2135
        %2411 = vmatpush.bf16.msra.mxu0 %v2131
        %2412 = vmatpush.bf16.msra.mxu0 %v2127
        %2413 = vmatpush.bf16.msra.mxu0 %v2123
        %2414 = vmatpush.bf16.msra.mxu0 %v2119
        %2415 = vmatmul.bf16.gmra.mxu0 %v1561
        %v2416 = vpop.f32.mrf.mxu0
        %v2417 = vadd.f32 %v2404, %v2416
        %v2418 = vpop.f32.mrf.mxu0
        %2419 = vdwg.mxu0
        %2420 = vmatpush.bf16.msra.mxu0 %v2179
        %2421 = vmatpush.bf16.msra.mxu0 %v2175
        %2422 = vmatpush.bf16.msra.mxu0 %v2171
        %2423 = vmatpush.bf16.msra.mxu0 %v2167
        %2424 = vmatpush.bf16.msra.mxu0 %v2163
        %2425 = vmatpush.bf16.msra.mxu0 %v2159
        %2426 = vmatpush.bf16.msra.mxu0 %v2155
        %2427 = vmatpush.bf16.msra.mxu0 %v2151
        %2428 = vmatmul.bf16.gmra.mxu0 %v1562
        %v2429 = vpop.f32.mrf.mxu0
        %v2430 = vadd.f32 %v2417, %v2429
        %v2431 = vpop.f32.mrf.mxu0
        %2432 = vdwg.mxu0
        %2433 = vmatpush.bf16.msra.mxu0 %v2211
        %2434 = vmatpush.bf16.msra.mxu0 %v2207
        %2435 = vmatpush.bf16.msra.mxu0 %v2203
        %2436 = vmatpush.bf16.msra.mxu0 %v2199
        %2437 = vmatpush.bf16.msra.mxu0 %v2195
        %2438 = vmatpush.bf16.msra.mxu0 %v2191
        %2439 = vmatpush.bf16.msra.mxu0 %v2187
        %2440 = vmatpush.bf16.msra.mxu0 %v2183
        %2441 = vmatmul.bf16.gmra.mxu0 %v1563
        %v2442 = vpop.f32.mrf.mxu0
        %v2443 = vadd.f32 %v2430, %v2442
        %v2444 = vpop.f32.mrf.mxu0
        %2445 = vdwg.mxu0
        %2446 = vmatpush.bf16.msra.mxu0 %v2116
        %2447 = vmatpush.bf16.msra.mxu0 %v2112
        %2448 = vmatpush.bf16.msra.mxu0 %v2108
        %2449 = vmatpush.bf16.msra.mxu0 %v2104
        %2450 = vmatpush.bf16.msra.mxu0 %v2100
        %2451 = vmatpush.bf16.msra.mxu0 %v2096
        %2452 = vmatpush.bf16.msra.mxu0 %v2092
        %2453 = vmatpush.bf16.msra.mxu0 %v2088
        %2454 = vmatmul.bf16.gmra.mxu0 %v1560
        %v2455 = vpop.f32.mrf.mxu0
        %v2456 = vadd.f32 %v1696, %v2455
        %v2457 = vpop.f32.mrf.mxu0
        %2458 = vdwg.mxu0
        %2459 = vmatpush.bf16.msra.mxu0 %v2148
        %2460 = vmatpush.bf16.msra.mxu0 %v2144
        %2461 = vmatpush.bf16.msra.mxu0 %v2140
        %2462 = vmatpush.bf16.msra.mxu0 %v2136
        %2463 = vmatpush.bf16.msra.mxu0 %v2132
        %2464 = vmatpush.bf16.msra.mxu0 %v2128
        %2465 = vmatpush.bf16.msra.mxu0 %v2124
        %2466 = vmatpush.bf16.msra.mxu0 %v2120
        %2467 = vmatmul.bf16.gmra.mxu0 %v1561
        %v2468 = vpop.f32.mrf.mxu0
        %v2469 = vadd.f32 %v2456, %v2468
        %v2470 = vpop.f32.mrf.mxu0
        %2471 = vdwg.mxu0
        %2472 = vmatpush.bf16.msra.mxu0 %v2180
        %2473 = vmatpush.bf16.msra.mxu0 %v2176
        %2474 = vmatpush.bf16.msra.mxu0 %v2172
        %2475 = vmatpush.bf16.msra.mxu0 %v2168
        %2476 = vmatpush.bf16.msra.mxu0 %v2164
        %2477 = vmatpush.bf16.msra.mxu0 %v2160
        %2478 = vmatpush.bf16.msra.mxu0 %v2156
        %2479 = vmatpush.bf16.msra.mxu0 %v2152
        %2480 = vmatmul.bf16.gmra.mxu0 %v1562
        %v2481 = vpop.f32.mrf.mxu0
        %v2482 = vadd.f32 %v2469, %v2481
        %v2483 = vpop.f32.mrf.mxu0
        %2484 = vdwg.mxu0
        %2485 = vmatpush.bf16.msra.mxu0 %v2212
        %2486 = vmatpush.bf16.msra.mxu0 %v2208
        %2487 = vmatpush.bf16.msra.mxu0 %v2204
        %2488 = vmatpush.bf16.msra.mxu0 %v2200
        %2489 = vmatpush.bf16.msra.mxu0 %v2196
        %2490 = vmatpush.bf16.msra.mxu0 %v2192
        %2491 = vmatpush.bf16.msra.mxu0 %v2188
        %2492 = vmatpush.bf16.msra.mxu0 %v2184
        %2493 = vmatmul.bf16.gmra.mxu0 %v1563
        %v2494 = vpop.f32.mrf.mxu0
        %v2495 = vadd.f32 %v2482, %v2494
        %v2496 = vpop.f32.mrf.mxu0
        %2497 = vdwg.mxu0
        %2498 = vmatpush.bf16.msra.mxu0 %v2117
        %2499 = vmatpush.bf16.msra.mxu0 %v2113
        %2500 = vmatpush.bf16.msra.mxu0 %v2109
        %2501 = vmatpush.bf16.msra.mxu0 %v2105
        %2502 = vmatpush.bf16.msra.mxu0 %v2101
        %2503 = vmatpush.bf16.msra.mxu0 %v2097
        %2504 = vmatpush.bf16.msra.mxu0 %v2093
        %2505 = vmatpush.bf16.msra.mxu0 %v2089
        %2506 = vmatmul.bf16.gmra.mxu0 %v1560
        %v2507 = vpop.f32.mrf.mxu0
        %v2508 = vadd.f32 %v1697, %v2507
        %v2509 = vpop.f32.mrf.mxu0
        %2510 = vdwg.mxu0
        %2511 = vmatpush.bf16.msra.mxu0 %v2149
        %2512 = vmatpush.bf16.msra.mxu0 %v2145
        %2513 = vmatpush.bf16.msra.mxu0 %v2141
        %2514 = vmatpush.bf16.msra.mxu0 %v2137
        %2515 = vmatpush.bf16.msra.mxu0 %v2133
        %2516 = vmatpush.bf16.msra.mxu0 %v2129
        %2517 = vmatpush.bf16.msra.mxu0 %v2125
        %2518 = vmatpush.bf16.msra.mxu0 %v2121
        %2519 = vmatmul.bf16.gmra.mxu0 %v1561
        %v2520 = vpop.f32.mrf.mxu0
        %v2521 = vadd.f32 %v2508, %v2520
        %v2522 = vpop.f32.mrf.mxu0
        %2523 = vdwg.mxu0
        %2524 = vmatpush.bf16.msra.mxu0 %v2181
        %2525 = vmatpush.bf16.msra.mxu0 %v2177
        %2526 = vmatpush.bf16.msra.mxu0 %v2173
        %2527 = vmatpush.bf16.msra.mxu0 %v2169
        %2528 = vmatpush.bf16.msra.mxu0 %v2165
        %2529 = vmatpush.bf16.msra.mxu0 %v2161
        %2530 = vmatpush.bf16.msra.mxu0 %v2157
        %2531 = vmatpush.bf16.msra.mxu0 %v2153
        %2532 = vmatmul.bf16.gmra.mxu0 %v1562
        %v2533 = vpop.f32.mrf.mxu0
        %v2534 = vadd.f32 %v2521, %v2533
        %v2535 = vpop.f32.mrf.mxu0
        %2536 = vdwg.mxu0
        %2537 = vmatpush.bf16.msra.mxu0 %v2213
        %2538 = vmatpush.bf16.msra.mxu0 %v2209
        %2539 = vmatpush.bf16.msra.mxu0 %v2205
        %2540 = vmatpush.bf16.msra.mxu0 %v2201
        %2541 = vmatpush.bf16.msra.mxu0 %v2197
        %2542 = vmatpush.bf16.msra.mxu0 %v2193
        %2543 = vmatpush.bf16.msra.mxu0 %v2189
        %2544 = vmatpush.bf16.msra.mxu0 %v2185
        %2545 = vmatmul.bf16.gmra.mxu0 %v1563
        %v2546 = vpop.f32.mrf.mxu0
        %v2547 = vadd.f32 %v2534, %v2546
        %v2548 = vpop.f32.mrf.mxu0
        %2549 = vdwg.mxu0
        %v2550 = vmax.f32 %v2391, 0.0
        %v2551 = vmax.f32 %v2443, 0.0
        %v2552 = vmax.f32 %v2495, 0.0
        %v2553 = vmax.f32 %v2547, 0.0
        %v2554 = vpack.c.bf16 %v2550, %v2550
        %v2555 = vpack.c.bf16 %v2551, %v2551
        %v2556 = vpack.c.bf16 %v2552, %v2552
        %v2557 = vpack.c.bf16 %v2553, %v2553
        %v2558 = vld [vmem:[#allocation13] sm:$0xf]
        %v2559 = vld [vmem:[#allocation13 + $0x4] sm:$0xf]
        %v2560 = vld [vmem:[#allocation13 + $0x8] sm:$0xf]
        %v2561 = vld [vmem:[#allocation13 + $0xc] sm:$0xf]
        %v2562 = vld [vmem:[#allocation13 + $0x10] sm:$0xf]
        %v2563 = vld [vmem:[#allocation13 + $0x14] sm:$0xf]
        %v2564 = vld [vmem:[#allocation13 + $0x18] sm:$0xf]
        %v2565 = vld [vmem:[#allocation13 + $0x1c] sm:$0xf]
        %v2566 = vld [vmem:[#allocation13 + $0x20] sm:$0xf]
        %v2567 = vld [vmem:[#allocation13 + $0x24] sm:$0xf]
        %v2568 = vld [vmem:[#allocation13 + $0x28] sm:$0xf]
        %v2569 = vld [vmem:[#allocation13 + $0x2c] sm:$0xf]
        %v2570 = vld [vmem:[#allocation13 + $0x30] sm:$0xf]
        %v2571 = vld [vmem:[#allocation13 + $0x34] sm:$0xf]
        %v2572 = vld [vmem:[#allocation13 + $0x38] sm:$0xf]
        %v2573 = vld [vmem:[#allocation13 + $0x3c] sm:$0xf]
        %v2574 = vld [vmem:[#allocation13 + $0x40] sm:$0xf]
        %v2575 = vld [vmem:[#allocation13 + $0x44] sm:$0xf]
        %v2576 = vld [vmem:[#allocation13 + $0x48] sm:$0xf]
        %v2577 = vld [vmem:[#allocation13 + $0x4c] sm:$0xf]
        %v2578 = vld [vmem:[#allocation13 + $0x50] sm:$0xf]
        %v2579 = vld [vmem:[#allocation13 + $0x54] sm:$0xf]
        %v2580 = vld [vmem:[#allocation13 + $0x58] sm:$0xf]
        %v2581 = vld [vmem:[#allocation13 + $0x5c] sm:$0xf]
        %v2582 = vld [vmem:[#allocation13 + $0x60] sm:$0xf]
        %v2583 = vld [vmem:[#allocation13 + $0x64] sm:$0xf]
        %v2584 = vld [vmem:[#allocation13 + $0x68] sm:$0xf]
        %v2585 = vld [vmem:[#allocation13 + $0x6c] sm:$0xf]
        %v2586 = vld [vmem:[#allocation13 + $0x70] sm:$0xf]
        %v2587 = vld [vmem:[#allocation13 + $0x74] sm:$0xf]
        %v2588 = vld [vmem:[#allocation13 + $0x78] sm:$0xf]
        %v2589 = vld [vmem:[#allocation13 + $0x7c] sm:$0xf]
        %v2590 = vld [vmem:[#allocation13 + $0x80] sm:$0xf]
        %v2591 = vld [vmem:[#allocation13 + $0x84] sm:$0xf]
        %v2592 = vld [vmem:[#allocation13 + $0x88] sm:$0xf]
        %v2593 = vld [vmem:[#allocation13 + $0x8c] sm:$0xf]
        %v2594 = vld [vmem:[#allocation13 + $0x90] sm:$0xf]
        %v2595 = vld [vmem:[#allocation13 + $0x94] sm:$0xf]
        %v2596 = vld [vmem:[#allocation13 + $0x98] sm:$0xf]
        %v2597 = vld [vmem:[#allocation13 + $0x9c] sm:$0xf]
        %v2598 = vld [vmem:[#allocation13 + $0xa0] sm:$0xf]
        %v2599 = vld [vmem:[#allocation13 + $0xa4] sm:$0xf]
        %v2600 = vld [vmem:[#allocation13 + $0xa8] sm:$0xf]
        %v2601 = vld [vmem:[#allocation13 + $0xac] sm:$0xf]
        %v2602 = vld [vmem:[#allocation13 + $0xb0] sm:$0xf]
        %v2603 = vld [vmem:[#allocation13 + $0xb4] sm:$0xf]
        %v2604 = vld [vmem:[#allocation13 + $0xb8] sm:$0xf]
        %v2605 = vld [vmem:[#allocation13 + $0xbc] sm:$0xf]
        %v2606 = vld [vmem:[#allocation13 + $0xc0] sm:$0xf]
        %v2607 = vld [vmem:[#allocation13 + $0xc4] sm:$0xf]
        %v2608 = vld [vmem:[#allocation13 + $0xc8] sm:$0xf]
        %v2609 = vld [vmem:[#allocation13 + $0xcc] sm:$0xf]
        %v2610 = vld [vmem:[#allocation13 + $0xd0] sm:$0xf]
        %v2611 = vld [vmem:[#allocation13 + $0xd4] sm:$0xf]
        %v2612 = vld [vmem:[#allocation13 + $0xd8] sm:$0xf]
        %v2613 = vld [vmem:[#allocation13 + $0xdc] sm:$0xf]
        %v2614 = vld [vmem:[#allocation13 + $0xe0] sm:$0xf]
        %v2615 = vld [vmem:[#allocation13 + $0xe4] sm:$0xf]
        %v2616 = vld [vmem:[#allocation13 + $0xe8] sm:$0xf]
        %v2617 = vld [vmem:[#allocation13 + $0xec] sm:$0xf]
        %v2618 = vld [vmem:[#allocation13 + $0xf0] sm:$0xf]
        %v2619 = vld [vmem:[#allocation13 + $0xf4] sm:$0xf]
        %v2620 = vld [vmem:[#allocation13 + $0xf8] sm:$0xf]
        %v2621 = vld [vmem:[#allocation13 + $0xfc] sm:$0xf]
        %v2622 = vld [vmem:[%s8] sm:$0x1]
        %v2624 = vperm.slane %v2622, 0
        %v2690 = vunpack.c.l.b16 %v2558
        %v2691 = vunpack.c.l.b16 %v2559
        %v2692 = vunpack.c.l.b16 %v2560
        %v2693 = vunpack.c.l.b16 %v2561
        %v2694 = vunpack.c.l.b16 %v2562
        %v2695 = vunpack.c.l.b16 %v2563
        %v2696 = vunpack.c.l.b16 %v2564
        %v2697 = vunpack.c.l.b16 %v2565
        %v2698 = vunpack.c.l.b16 %v2566
        %v2699 = vunpack.c.l.b16 %v2567
        %v2700 = vunpack.c.l.b16 %v2568
        %v2701 = vunpack.c.l.b16 %v2569
        %v2702 = vunpack.c.l.b16 %v2570
        %v2703 = vunpack.c.l.b16 %v2571
        %v2704 = vunpack.c.l.b16 %v2572
        %v2705 = vunpack.c.l.b16 %v2573
        %v2706 = vunpack.c.l.b16 %v2574
        %v2707 = vunpack.c.l.b16 %v2575
        %v2708 = vunpack.c.l.b16 %v2576
        %v2709 = vunpack.c.l.b16 %v2577
        %v2710 = vunpack.c.l.b16 %v2578
        %v2711 = vunpack.c.l.b16 %v2579
        %v2712 = vunpack.c.l.b16 %v2580
        %v2713 = vunpack.c.l.b16 %v2581
        %v2714 = vunpack.c.l.b16 %v2582
        %v2715 = vunpack.c.l.b16 %v2583
        %v2716 = vunpack.c.l.b16 %v2584
        %v2717 = vunpack.c.l.b16 %v2585
        %v2718 = vunpack.c.l.b16 %v2586
        %v2719 = vunpack.c.l.b16 %v2587
        %v2720 = vunpack.c.l.b16 %v2588
        %v2721 = vunpack.c.l.b16 %v2589
        %v2722 = vunpack.c.l.b16 %v2590
        %v2723 = vunpack.c.l.b16 %v2591
        %v2724 = vunpack.c.l.b16 %v2592
        %v2725 = vunpack.c.l.b16 %v2593
        %v2726 = vunpack.c.l.b16 %v2594
        %v2727 = vunpack.c.l.b16 %v2595
        %v2728 = vunpack.c.l.b16 %v2596
        %v2729 = vunpack.c.l.b16 %v2597
        %v2730 = vunpack.c.l.b16 %v2598
        %v2731 = vunpack.c.l.b16 %v2599
        %v2732 = vunpack.c.l.b16 %v2600
        %v2733 = vunpack.c.l.b16 %v2601
        %v2734 = vunpack.c.l.b16 %v2602
        %v2735 = vunpack.c.l.b16 %v2603
        %v2736 = vunpack.c.l.b16 %v2604
        %v2737 = vunpack.c.l.b16 %v2605
        %v2738 = vunpack.c.l.b16 %v2606
        %v2739 = vunpack.c.l.b16 %v2607
        %v2740 = vunpack.c.l.b16 %v2608
        %v2741 = vunpack.c.l.b16 %v2609
        %v2742 = vunpack.c.l.b16 %v2610
        %v2743 = vunpack.c.l.b16 %v2611
        %v2744 = vunpack.c.l.b16 %v2612
        %v2745 = vunpack.c.l.b16 %v2613
        %v2746 = vunpack.c.l.b16 %v2614
        %v2747 = vunpack.c.l.b16 %v2615
        %v2748 = vunpack.c.l.b16 %v2616
        %v2749 = vunpack.c.l.b16 %v2617
        %v2750 = vunpack.c.l.b16 %v2618
        %v2751 = vunpack.c.l.b16 %v2619
        %v2752 = vunpack.c.l.b16 %v2620
        %v2753 = vunpack.c.l.b16 %v2621
        %v2754 = vpack.c.b16 %v2691, %v2690
        %v2755 = vpack.c.b16 %v2693, %v2692
        %v2756 = vpack.c.b16 %v2695, %v2694
        %v2757 = vpack.c.b16 %v2697, %v2696
        %v2758 = vpack.c.b16 %v2699, %v2698
        %v2759 = vpack.c.b16 %v2701, %v2700
        %v2760 = vpack.c.b16 %v2703, %v2702
        %v2761 = vpack.c.b16 %v2705, %v2704
        %v2762 = vpack.c.b16 %v2707, %v2706
        %v2763 = vpack.c.b16 %v2709, %v2708
        %v2764 = vpack.c.b16 %v2711, %v2710
        %v2765 = vpack.c.b16 %v2713, %v2712
        %v2766 = vpack.c.b16 %v2715, %v2714
        %v2767 = vpack.c.b16 %v2717, %v2716
        %v2768 = vpack.c.b16 %v2719, %v2718
        %v2769 = vpack.c.b16 %v2721, %v2720
        %v2770 = vpack.c.b16 %v2723, %v2722
        %v2771 = vpack.c.b16 %v2725, %v2724
        %v2772 = vpack.c.b16 %v2727, %v2726
        %v2773 = vpack.c.b16 %v2729, %v2728
        %v2774 = vpack.c.b16 %v2731, %v2730
        %v2775 = vpack.c.b16 %v2733, %v2732
        %v2776 = vpack.c.b16 %v2735, %v2734
        %v2777 = vpack.c.b16 %v2737, %v2736
        %v2778 = vpack.c.b16 %v2739, %v2738
        %v2779 = vpack.c.b16 %v2741, %v2740
        %v2780 = vpack.c.b16 %v2743, %v2742
        %v2781 = vpack.c.b16 %v2745, %v2744
        %v2782 = vpack.c.b16 %v2747, %v2746
        %v2783 = vpack.c.b16 %v2749, %v2748
        %v2784 = vpack.c.b16 %v2751, %v2750
        %v2785 = vpack.c.b16 %v2753, %v2752
        %2818 = vmatpush.bf16.msra.mxu0 %v2761
        %2819 = vmatpush.bf16.msra.mxu0 %v2760
        %2820 = vmatpush.bf16.msra.mxu0 %v2759
        %2821 = vmatpush.bf16.msra.mxu0 %v2758
        %2822 = vmatpush.bf16.msra.mxu0 %v2757
        %2823 = vmatpush.bf16.msra.mxu0 %v2756
        %2824 = vmatpush.bf16.msra.mxu0 %v2755
        %2825 = vmatpush.bf16.msra.mxu0 %v2754
        %2826 = vmatmul.bf16.gmra.mxu0 %v2554
        %v2827 = vpop.f32.mrf.mxu0
        %v2828 = vadd.f32 %v2624, %v2827
        %v2829 = vpop.f32.mrf.mxu0
        %2830 = vdwg.mxu0
        %2831 = vmatpush.bf16.msra.mxu0 %v2769
        %2832 = vmatpush.bf16.msra.mxu0 %v2768
        %2833 = vmatpush.bf16.msra.mxu0 %v2767
        %2834 = vmatpush.bf16.msra.mxu0 %v2766
        %2835 = vmatpush.bf16.msra.mxu0 %v2765
        %2836 = vmatpush.bf16.msra.mxu0 %v2764
        %2837 = vmatpush.bf16.msra.mxu0 %v2763
        %2838 = vmatpush.bf16.msra.mxu0 %v2762
        %2839 = vmatmul.bf16.gmra.mxu0 %v2555
        %v2840 = vpop.f32.mrf.mxu0
        %v2841 = vadd.f32 %v2828, %v2840
        %v2842 = vpop.f32.mrf.mxu0
        %2843 = vdwg.mxu0
        %2844 = vmatpush.bf16.msra.mxu0 %v2777
        %2845 = vmatpush.bf16.msra.mxu0 %v2776
        %2846 = vmatpush.bf16.msra.mxu0 %v2775
        %2847 = vmatpush.bf16.msra.mxu0 %v2774
        %2848 = vmatpush.bf16.msra.mxu0 %v2773
        %2849 = vmatpush.bf16.msra.mxu0 %v2772
        %2850 = vmatpush.bf16.msra.mxu0 %v2771
        %2851 = vmatpush.bf16.msra.mxu0 %v2770
        %2852 = vmatmul.bf16.gmra.mxu0 %v2556
        %v2853 = vpop.f32.mrf.mxu0
        %v2854 = vadd.f32 %v2841, %v2853
        %v2855 = vpop.f32.mrf.mxu0
        %2856 = vdwg.mxu0
        %2857 = vmatpush.bf16.msra.mxu0 %v2785
        %2858 = vmatpush.bf16.msra.mxu0 %v2784
        %2859 = vmatpush.bf16.msra.mxu0 %v2783
        %2860 = vmatpush.bf16.msra.mxu0 %v2782
        %2861 = vmatpush.bf16.msra.mxu0 %v2781
        %2862 = vmatpush.bf16.msra.mxu0 %v2780
        %2863 = vmatpush.bf16.msra.mxu0 %v2779
        %2864 = vmatpush.bf16.msra.mxu0 %v2778
        %2865 = vmatmul.bf16.gmra.mxu0 %v2557
        %v2866 = vpop.f32.mrf.mxu0
        %v2867 = vadd.f32 %v2854, %v2866
        %v2868 = vpop.f32.mrf.mxu0
        %2869 = vdwg.mxu0
        %2870 = vst [vmem:[%s444] sm:$0xff] %v2867
        %s2871 = sand.u32 %s231, 1
        %s2872 = scalar_lea.sflag [#allocation4], %s2871
        %s2873 = sand.u32 %s231, 1
        %s2874 = smul.addr %s2873, 8
        %s2875 = scalar_lea.vmem [#allocation14], %s2874
        // Predicated region
        $region85: #{tpu_custom_call.1} parent=55 // pred_check
          %p2876 = pneg %p241
        $region86: #{tpu_custom_call.1} parent=55 // pred_check_branch
          %2878 = sbr.rel (%p2876) target = $region88
        $region87: #{tpu_custom_call.1} parent=55 // pred_region
          %2880 = vsyncadd %s2872, 0
          %s2881 = smul.addr %s29, 8
          %s2882 = scalar_lea.hbm %s9, %s2881
          %s2884 = sshll.u32 %s2875, 4
          %s2885 = int_to_ptr.vmem [resolvable:$true] %s2884
          %s2886 = sshll.u32 %s2882, 4
          %s2887 = int_to_ptr.hbm [resolvable:$true] %s2886
          %2889 = dma.vmem_to_hbm [thread:$0]  %s2885, 128, %s2887, %s2872
        $region88: #{tpu_custom_call.1} parent=55 // pred_fallthru
          _
      $region56: #{tpu_custom_call.1} parent=5 // pred_fallthru
        _
      %p2890 = scmp.le.s32.totalorder 2, %s24
      // Predicated region
      $region89: #{tpu_custom_call.1} parent=5 // pred_check
        %p2891 = pneg %p2890
      $region90: #{tpu_custom_call.1} parent=5 // pred_check_branch
        %2893 = sbr.rel (%p2891) target = $region92
      $region91: #{tpu_custom_call.1} parent=5 // pred_region
        %s2894 = ssub.s32 %s24, 2
        // Predicated region
        $region93: #{tpu_custom_call.1} parent=91 // pred_check
          %p2895 = pneg %p247
        $region94: #{tpu_custom_call.1} parent=91 // pred_check_branch
          %2897 = sbr.rel (%p2895) target = $region96
        $region95: #{tpu_custom_call.1} parent=91 // pred_region
          %s2898 = sand.u32 %s232, 1
          %s2899 = scalar_lea.sflag [#allocation4], %s2898
          %s2900 = sand.u32 %s232, 1
          %s2901 = smul.addr %s2900, 8
          %s2902 = scalar_lea.vmem [#allocation14], %s2901
          %2904 = dma.done %s2899, 128
        $region96: #{tpu_custom_call.1} parent=91 // pred_fallthru
          _
      $region92: #{tpu_custom_call.1} parent=5 // pred_fallthru
        _
    $region6: #{tpu_custom_call.1} parent=1 // loop_footer
      %s28 = sadd.s32 1, %s24
    $region7: #{tpu_custom_call.1} parent=1 // loop_footer_branch
      %23 = sbr.rel target = $region3
    $region8: #{tpu_custom_call.1} parent=1 // loop_exit
      _
    %2905 = vsyncpa [#allocation3], 1
    %s2906 = scalar_lea.sflag [#allocation3], 1
    %2907 = vsyncpa %s2906, 1
    %2908 = vsyncpa [#allocation6], 1
    %2909 = vsyncpa [#allocation9], 1
    %2910 = vsyncpa [#allocation12], 1
    %2911 = vsyncpa [#allocation4], 1
    %s2912 = scalar_lea.sflag [#allocation4], 1
    %2913 = vsyncpa %s2912, 1

</llo_original>
